<compile_context>
chip_gen: v5e
topology: v5e:2x2
jax: 0.10.0
libtpu: 0.0.40
codegen_flags: <defaults>
</compile_context>

<pallas_src>
import math

import jax
import jax.numpy as jnp
from jax.experimental import pallas as pl
from jax.experimental.pallas import tpu as pltpu


# ----------------------------- conv kernels --------------------------------

def pallas_conv3x3(x, w, b):
    """3x3 'same' convolution, NCHW input -> (N, H*W, Cm) output.

    The 9 taps are accumulated inside the kernel as 9 small MXU matmuls over
    shifted windows of the flattened, zero-padded raster, so no 9x im2col
    matrix is ever materialized in HBM.
    """
    N, Cin, H, W = x.shape
    Cm = w.shape[0]
    Wp = W + 2                        # padded row width
    Mo = H * Wp                       # outputs computed over W-padded rows; cropped later
    # NHWC, zero-padded (1 top, 2 bottom, 1 left/right).  The extra bottom row
    # only feeds the throw-away padded output columns but keeps every in-kernel
    # window slice statically in bounds.
    xp = jnp.pad(x.transpose(0, 2, 3, 1), ((0, 0), (1, 2), (1, 1), (0, 0)))
    P = (H + 3) * Wp
    xp = xp.reshape(N, P, Cin)
    # weights in (kh, kw) tap order: (Cm, Cin, 3, 3) -> (9, Cin, Cm)
    wt = jnp.transpose(w, (2, 3, 1, 0)).reshape(9, Cin, Cm)

    def kernel(xp_ref, w_ref, b_ref, o_ref):
        acc = jnp.zeros((Mo, Cm), jnp.float32)
        for kh in range(3):
            for kw in range(3):
                off = kh * Wp + kw
                patch = xp_ref[pl.ds(off, Mo), :]            # (Mo, Cin) shifted window
                acc = acc + jnp.dot(patch, w_ref[kh * 3 + kw],
                                    preferred_element_type=jnp.float32)
        o_ref[...] = (acc + b_ref[...]).astype(o_ref.dtype)

    out = pl.pallas_call(
        kernel,
        out_shape=jax.ShapeDtypeStruct((N, Mo, Cm), jnp.float32),
        grid=(N,),
        in_specs=[pl.BlockSpec((None, P, Cin), lambda n: (n, 0, 0)),
                  pl.BlockSpec((9, Cin, Cm), lambda n: (0, 0, 0)),
                  pl.BlockSpec((1, Cm), lambda n: (0, 0))],
        out_specs=pl.BlockSpec((None, Mo, Cm), lambda n: (n, 0, 0)),
        compiler_params=pltpu.CompilerParams(
            dimension_semantics=("parallel",)),
    )(xp, wt, b.reshape(1, Cm))
    # drop the two padded columns of every output row
    out = out.reshape(N, H, Wp, Cm)[:, :, :W, :]
    return out.reshape(N, H * W, Cm)


def _matmul_bias_kernel(a_ref, b_ref, bias_ref, o_ref):
    o_ref[...] = (jnp.dot(a_ref[...], b_ref[...],
                          preferred_element_type=jnp.float32)
                  + bias_ref[...]).astype(o_ref.dtype)


def pallas_matmul_bias(a, b, bias):
    """(M, K) @ (K, N) + bias[N], tiled over M so the grid has >=2 parallel steps."""
    M, K = a.shape
    K2, Nc = b.shape
    assert K == K2
    tm = M
    for cand in (256, 128, 64, 32, 16, 8):
        if cand < M and M % cand == 0:
            tm = cand
            break
    return pl.pallas_call(
        _matmul_bias_kernel,
        out_shape=jax.ShapeDtypeStruct((M, Nc), jnp.float32),
        grid=(M // tm,),
        in_specs=[pl.BlockSpec((tm, K), lambda i: (i, 0)),
                  pl.BlockSpec((K, Nc), lambda i: (0, 0)),
                  pl.BlockSpec((1, Nc), lambda i: (0, 0))],
        out_specs=pl.BlockSpec((tm, Nc), lambda i: (i, 0)),
        compiler_params=pltpu.CompilerParams(
            dimension_semantics=("parallel",)),
    )(a, b, bias.reshape(1, Nc))


# ----------------------- bucketed attention kernel --------------------------

def _pick_group_batch(NH, K, T):
    """Hash-groups per grid step: amortize per-step overhead, keep >=2 grid steps
    (both v7x TensorCores busy) and keep the f32 score/exp/prob intermediates
    under a v7x-safe VMEM budget."""
    budget = 8 * 1024 * 1024
    best = 1
    for gh in range(1, NH + 1):
        if NH % gh:
            continue
        if NH >= 2 and NH // gh < 2:
            continue
        if 3 * gh * K * T * (3 * T) * 4 > budget:
            continue
        best = gh
    return best


def nlsa_attention_core(x_att, y_att):
    """Bucketed attention over sorted embeddings.

    x_att: (N*n_hashes, n_chunks, chunk, C)   un-normalized queries
    y_att: (N*n_hashes, n_chunks, chunk, Cr)  values
    Returns:
      ret: (N*n_hashes, n_chunks, chunk, Cr)
      lse: (N*n_hashes, n_chunks, chunk)      logsumexp of raw scores (lane-dense)
    Key normalization and +-1 adjacent-bucket assembly happen inside the kernel,
    so queries/keys/values are read from HBM exactly once (no 3x duplication).
    """
    NH, K, T, C = x_att.shape
    Cr = y_att.shape[-1]
    gh = _pick_group_batch(NH, K, T)
    steps = NH // gh

    def kernel(x_ref, y_ref, ret_ref, lse_ref):
        x = x_ref[...]                                   # (gh, K, T, C)
        y = y_ref[...]                                   # (gh, K, T, Cr)
        # F.normalize(p=2, dim=-1, eps=5e-5) for the keys
        nrm = jnp.sqrt(jnp.sum(x * x, axis=-1, keepdims=True))
        xn = x / jnp.maximum(nrm, 5e-5)

        def add_adjacent(v):                             # +-1 chunk within each group
            if K == 1:
                back, fwd = v, v
            else:
                back = jnp.concatenate([v[:, -1:], v[:, :-1]], axis=1)
                fwd = jnp.concatenate([v[:, 1:], v[:, :1]], axis=1)
            return jnp.concatenate([v, back, fwd], axis=2)   # (gh, K, 3T, .)

        B = gh * K
        q = x.reshape(B, T, C)
        k_all = add_adjacent(xn).reshape(B, 3 * T, C)
        v_all = add_adjacent(y).reshape(B, 3 * T, Cr)

        s = jnp.einsum('bqc,bkc->bqk', q, k_all,
                       preferred_element_type=jnp.float32)   # (B, T, 3T)
        m = jnp.max(s, axis=-1, keepdims=True)
        e = jnp.exp(s - m)                                   # single exp pass
        denom = jnp.sum(e, axis=-1, keepdims=True)
        p = e * pl.reciprocal(denom, approx=True)
        ret = jnp.einsum('bqk,bkc->bqc', p, v_all,
                         preferred_element_type=jnp.float32)
        ret_ref[...] = ret.reshape(gh, K, T, Cr).astype(ret_ref.dtype)
        # lane-dense logsumexp: reduce without keepdims so `chunk` lands on lanes
        lse = jnp.max(s, axis=-1) + jnp.log(jnp.sum(e, axis=-1))
        lse_ref[...] = lse.reshape(gh, K, T).astype(lse_ref.dtype)

    return pl.pallas_call(
        kernel,
        out_shape=(jax.ShapeDtypeStruct((NH, K, T, Cr), jnp.float32),
                   jax.ShapeDtypeStruct((NH, K, T), jnp.float32)),
        grid=(steps,),
        in_specs=[pl.BlockSpec((gh, K, T, C), lambda g: (g, 0, 0, 0)),
                  pl.BlockSpec((gh, K, T, Cr), lambda g: (g, 0, 0, 0))],
        out_specs=(pl.BlockSpec((gh, K, T, Cr), lambda g: (g, 0, 0, 0)),
                   pl.BlockSpec((gh, K, T), lambda g: (g, 0, 0))),
        compiler_params=pltpu.CompilerParams(
            dimension_semantics=("parallel",),
            vmem_limit_bytes=48 * 1024 * 1024),
    )(x_att, y_att)


# ------------------------------- JAX glue -----------------------------------

def nonlocal_sparse_attention(x, params, *, n_hashes=4, chunk_size=128,
                              reduction=4, res_scale=1.0, rot_key=None):
    N, Cin, H, W = x.shape
    L = H * W

    # conv_match: 3x3 conv Cin -> Cin // reduction (fused-tap Pallas kernel)
    wm, bm = params['w_match'], params['b_match']
    Cm = wm.shape[0]
    x_embed = pallas_conv3x3(x, wm, bm)               # (N, L, C)

    # conv_assembly: 1x1 conv Cin -> Cin (M-tiled Pallas matmul)
    wa, ba = params['w_assembly'], params['b_assembly']
    a1 = x.transpose(0, 2, 3, 1).reshape(N * L, Cin)
    y_embed = pallas_matmul_bias(a1, wa.reshape(Cin, Cin).T, ba)
    y_embed = y_embed.reshape(N, L, Cin)              # (N, L, C*reduction)

    C = Cm
    Cr = Cin

    # ------------------- LSH hashing (small; plain JAX) -------------------
    hash_buckets = min(L // chunk_size + (L // chunk_size) % 2, 128)
    rr = jax.random.normal(rot_key, (1, C, n_hashes, hash_buckets // 2),
                           dtype=x_embed.dtype)
    rr = jnp.broadcast_to(rr, (N, C, n_hashes, hash_buckets // 2))
    rotated = jnp.einsum('btf,bfhi->bhti', x_embed, rr)
    rotated = jnp.concatenate([rotated, -rotated], axis=-1)
    hash_codes = jnp.argmax(rotated, axis=-1)         # (N, n_hashes, L)
    offsets = (jnp.arange(n_hashes) * hash_buckets).reshape(1, -1, 1)
    hash_codes = (hash_codes + offsets).reshape(N, -1)

    # TODO(synk): sort/gather (data-dependent permutation) stays in plain JAX.
    indices = jnp.argsort(hash_codes, axis=-1)
    undo_sort = jnp.argsort(indices, axis=-1)
    mod_indices = indices % L

    x_sorted = jnp.take_along_axis(x_embed, mod_indices[:, :, None], axis=1)
    y_sorted = jnp.take_along_axis(y_embed, mod_indices[:, :, None], axis=1)

    padding = (chunk_size - L % chunk_size) if (L % chunk_size != 0) else 0
    x_att = x_sorted.reshape(N, n_hashes, -1, C)
    y_att = y_sorted.reshape(N, n_hashes, -1, Cr)
    if padding:
        x_att = jnp.concatenate([x_att, x_att[:, :, -padding:, :]], axis=2)
        y_att = jnp.concatenate([y_att, y_att[:, :, -padding:, :]], axis=2)
    n_chunks = x_att.shape[2] // chunk_size
    NH = N * n_hashes
    x_att = x_att.reshape(NH, n_chunks, chunk_size, C)
    y_att = y_att.reshape(NH, n_chunks, chunk_size, Cr)

    # ----------------- Pallas bucketed-attention hot path -----------------
    ret, lse = nlsa_attention_core(x_att, y_att)
    ret = ret.reshape(N, n_hashes, n_chunks * chunk_size, Cr)
    bucket_score = lse.reshape(N, n_hashes, n_chunks * chunk_size)

    if padding:
        ret = ret[:, :, :-padding, :]
        bucket_score = bucket_score[:, :, :-padding]

    ret = ret.reshape(N, n_hashes * L, Cr)
    bucket_score = bucket_score.reshape(N, n_hashes * L)
    ret = jnp.take_along_axis(ret, undo_sort[:, :, None], axis=1)
    bucket_score = jnp.take_along_axis(bucket_score, undo_sort, axis=1)

    ret = ret.reshape(N, n_hashes, L, Cr)
    bucket_score = bucket_score.reshape(N, n_hashes, L, 1)
    probs = jax.nn.softmax(bucket_score, axis=1)
    ret = jnp.sum(ret * probs, axis=1)                # (N, L, Cr)

    out = ret.transpose(0, 2, 1).reshape(N, Cr, H, W) * res_scale + x
    return out


# --------------------------------- main --------------------------------------

if __name__ == "__main__":
    key = jax.random.PRNGKey(0)
    N, channels, H, W = 2, 16, 16, 16
    reduction = 4
    n_hashes = 4
    chunk_size = 128         # lane-aligned bucket size; L=256 -> 2 chunks per hash

    k1, k2, k3, k4, k5, k6 = jax.random.split(key, 6)
    x = jax.random.normal(k1, (N, channels, H, W), dtype=jnp.float32)

    Cm = channels // reduction
    # deterministic PyTorch-Conv2d-style init (uniform +- 1/sqrt(fan_in))
    bound_m = 1.0 / math.sqrt(channels * 3 * 3)
    w_match = jax.random.uniform(k2, (Cm, channels, 3, 3),
                                 minval=-bound_m, maxval=bound_m,
                                 dtype=jnp.float32)
    b_match = jax.random.uniform(k3, (Cm,), minval=-bound_m, maxval=bound_m,
                                 dtype=jnp.float32)
    bound_a = 1.0 / math.sqrt(channels)
    w_assembly = jax.random.uniform(k4, (channels, channels, 1, 1),
                                    minval=-bound_a, maxval=bound_a,
                                    dtype=jnp.float32)
    b_assembly = jax.random.uniform(k5, (channels,), minval=-bound_a,
                                    maxval=bound_a, dtype=jnp.float32)

    params = dict(w_match=w_match, b_match=b_match,
                  w_assembly=w_assembly, b_assembly=b_assembly)

    out = nonlocal_sparse_attention(
        x, params, n_hashes=n_hashes, chunk_size=chunk_size,
        reduction=reduction, res_scale=1.0, rot_key=k6)
    out = jax.block_until_ready(out)

    assert out.shape == x.shape, out.shape
    assert bool(jnp.all(jnp.isfinite(out)))
    print("KERNEL_OK")
</pallas_src>

<mosaic_0001>
module attributes {stable_mosaic.version = 11 : i64} {
  func.func @kernel(%arg0: i32, %arg1: memref<1x342x16xf32, #tpu.memory_space<vmem>>, %arg2: memref<9x16x4xf32, #tpu.memory_space<vmem>>, %arg3: memref<1x4xf32, #tpu.memory_space<vmem>>, %arg4: memref<1x288x4xf32, #tpu.memory_space<vmem>>) attributes {dimension_semantics = [#tpu.dimension_semantics<parallel>], iteration_bounds = array<i64: 2>, scalar_prefetch = 0 : i64, scratch_operands = 0 : i64, tpu.core_type = #tpu.core_type<tc>, window_params = [{transform_indices = @transform_0, window_bounds = array<i64: 1, 342, 16>}, {pipeline_mode = #tpu.pipeline_mode<synchronous>, transform_indices = @transform_1, window_bounds = array<i64: 9, 16, 4>}, {pipeline_mode = #tpu.pipeline_mode<synchronous>, transform_indices = @transform_2, window_bounds = array<i64: 1, 4>}, {transform_indices = @transform_3, window_bounds = array<i64: 1, 288, 4>}]} {
    %cst = arith.constant 0.000000e+00 : f32
    %0 = vector.broadcast %cst : f32 to vector<288x4xf32>
    %c0 = arith.constant 0 : index
    %c0_0 = arith.constant 0 : index
    %c0_1 = arith.constant 0 : index
    %1 = vector.load %arg1[%c0, %c0_0, %c0_1] : memref<1x342x16xf32, #tpu.memory_space<vmem>>, vector<1x288x16xf32>
    %2 = vector.shape_cast %1 : vector<1x288x16xf32> to vector<288x16xf32>
    %c0_2 = arith.constant 0 : index
    %c0_3 = arith.constant 0 : index
    %c0_4 = arith.constant 0 : index
    %3 = vector.load %arg2[%c0_2, %c0_3, %c0_4] : memref<9x16x4xf32, #tpu.memory_space<vmem>>, vector<1x16x4xf32>
    %4 = vector.shape_cast %3 : vector<1x16x4xf32> to vector<16x4xf32>
    %cst_5 = arith.constant dense<0.000000e+00> : vector<288x4xf32>
    %5 = tpu.matmul %2, %4, %cst_5 {dimension_numbers = #tpu.dot_dimension_numbers<[1], [0], [0], [1], [0, 0, 1, 1], [], []>} : vector<288x16xf32>, vector<16x4xf32>, vector<288x4xf32> -> vector<288x4xf32>
    %6 = arith.addf %0, %5 : vector<288x4xf32>
    %c0_6 = arith.constant 0 : index
    %c1 = arith.constant 1 : index
    %c0_7 = arith.constant 0 : index
    %7 = vector.load %arg1[%c0_6, %c1, %c0_7] : memref<1x342x16xf32, #tpu.memory_space<vmem>>, vector<1x288x16xf32>
    %8 = vector.shape_cast %7 : vector<1x288x16xf32> to vector<288x16xf32>
    %c1_8 = arith.constant 1 : index
    %c0_9 = arith.constant 0 : index
    %c0_10 = arith.constant 0 : index
    %9 = vector.load %arg2[%c1_8, %c0_9, %c0_10] : memref<9x16x4xf32, #tpu.memory_space<vmem>>, vector<1x16x4xf32>
    %10 = vector.shape_cast %9 : vector<1x16x4xf32> to vector<16x4xf32>
    %cst_11 = arith.constant dense<0.000000e+00> : vector<288x4xf32>
    %11 = tpu.matmul %8, %10, %cst_11 {dimension_numbers = #tpu.dot_dimension_numbers<[1], [0], [0], [1], [0, 0, 1, 1], [], []>} : vector<288x16xf32>, vector<16x4xf32>, vector<288x4xf32> -> vector<288x4xf32>
    %12 = arith.addf %6, %11 : vector<288x4xf32>
    %c0_12 = arith.constant 0 : index
    %c2 = arith.constant 2 : index
    %c0_13 = arith.constant 0 : index
    %13 = vector.load %arg1[%c0_12, %c2, %c0_13] : memref<1x342x16xf32, #tpu.memory_space<vmem>>, vector<1x288x16xf32>
    %14 = vector.shape_cast %13 : vector<1x288x16xf32> to vector<288x16xf32>
    %c2_14 = arith.constant 2 : index
    %c0_15 = arith.constant 0 : index
    %c0_16 = arith.constant 0 : index
    %15 = vector.load %arg2[%c2_14, %c0_15, %c0_16] : memref<9x16x4xf32, #tpu.memory_space<vmem>>, vector<1x16x4xf32>
    %16 = vector.shape_cast %15 : vector<1x16x4xf32> to vector<16x4xf32>
    %cst_17 = arith.constant dense<0.000000e+00> : vector<288x4xf32>
    %17 = tpu.matmul %14, %16, %cst_17 {dimension_numbers = #tpu.dot_dimension_numbers<[1], [0], [0], [1], [0, 0, 1, 1], [], []>} : vector<288x16xf32>, vector<16x4xf32>, vector<288x4xf32> -> vector<288x4xf32>
    %18 = arith.addf %12, %17 : vector<288x4xf32>
    %c0_18 = arith.constant 0 : index
    %c18 = arith.constant 18 : index
    %c0_19 = arith.constant 0 : index
    %19 = vector.load %arg1[%c0_18, %c18, %c0_19] : memref<1x342x16xf32, #tpu.memory_space<vmem>>, vector<1x288x16xf32>
    %20 = vector.shape_cast %19 : vector<1x288x16xf32> to vector<288x16xf32>
    %c3 = arith.constant 3 : index
    %c0_20 = arith.constant 0 : index
    %c0_21 = arith.constant 0 : index
    %21 = vector.load %arg2[%c3, %c0_20, %c0_21] : memref<9x16x4xf32, #tpu.memory_space<vmem>>, vector<1x16x4xf32>
    %22 = vector.shape_cast %21 : vector<1x16x4xf32> to vector<16x4xf32>
    %cst_22 = arith.constant dense<0.000000e+00> : vector<288x4xf32>
    %23 = tpu.matmul %20, %22, %cst_22 {dimension_numbers = #tpu.dot_dimension_numbers<[1], [0], [0], [1], [0, 0, 1, 1], [], []>} : vector<288x16xf32>, vector<16x4xf32>, vector<288x4xf32> -> vector<288x4xf32>
    %24 = arith.addf %18, %23 : vector<288x4xf32>
    %c0_23 = arith.constant 0 : index
    %c19 = arith.constant 19 : index
    %c0_24 = arith.constant 0 : index
    %25 = vector.load %arg1[%c0_23, %c19, %c0_24] : memref<1x342x16xf32, #tpu.memory_space<vmem>>, vector<1x288x16xf32>
    %26 = vector.shape_cast %25 : vector<1x288x16xf32> to vector<288x16xf32>
    %c4 = arith.constant 4 : index
    %c0_25 = arith.constant 0 : index
    %c0_26 = arith.constant 0 : index
    %27 = vector.load %arg2[%c4, %c0_25, %c0_26] : memref<9x16x4xf32, #tpu.memory_space<vmem>>, vector<1x16x4xf32>
    %28 = vector.shape_cast %27 : vector<1x16x4xf32> to vector<16x4xf32>
    %cst_27 = arith.constant dense<0.000000e+00> : vector<288x4xf32>
    %29 = tpu.matmul %26, %28, %cst_27 {dimension_numbers = #tpu.dot_dimension_numbers<[1], [0], [0], [1], [0, 0, 1, 1], [], []>} : vector<288x16xf32>, vector<16x4xf32>, vector<288x4xf32> -> vector<288x4xf32>
    %30 = arith.addf %24, %29 : vector<288x4xf32>
    %c0_28 = arith.constant 0 : index
    %c20 = arith.constant 20 : index
    %c0_29 = arith.constant 0 : index
    %31 = vector.load %arg1[%c0_28, %c20, %c0_29] : memref<1x342x16xf32, #tpu.memory_space<vmem>>, vector<1x288x16xf32>
    %32 = vector.shape_cast %31 : vector<1x288x16xf32> to vector<288x16xf32>
    %c5 = arith.constant 5 : index
    %c0_30 = arith.constant 0 : index
    %c0_31 = arith.constant 0 : index
    %33 = vector.load %arg2[%c5, %c0_30, %c0_31] : memref<9x16x4xf32, #tpu.memory_space<vmem>>, vector<1x16x4xf32>
    %34 = vector.shape_cast %33 : vector<1x16x4xf32> to vector<16x4xf32>
    %cst_32 = arith.constant dense<0.000000e+00> : vector<288x4xf32>
    %35 = tpu.matmul %32, %34, %cst_32 {dimension_numbers = #tpu.dot_dimension_numbers<[1], [0], [0], [1], [0, 0, 1, 1], [], []>} : vector<288x16xf32>, vector<16x4xf32>, vector<288x4xf32> -> vector<288x4xf32>
    %36 = arith.addf %30, %35 : vector<288x4xf32>
    %c0_33 = arith.constant 0 : index
    %c36 = arith.constant 36 : index
    %c0_34 = arith.constant 0 : index
    %37 = vector.load %arg1[%c0_33, %c36, %c0_34] : memref<1x342x16xf32, #tpu.memory_space<vmem>>, vector<1x288x16xf32>
    %38 = vector.shape_cast %37 : vector<1x288x16xf32> to vector<288x16xf32>
    %c6 = arith.constant 6 : index
    %c0_35 = arith.constant 0 : index
    %c0_36 = arith.constant 0 : index
    %39 = vector.load %arg2[%c6, %c0_35, %c0_36] : memref<9x16x4xf32, #tpu.memory_space<vmem>>, vector<1x16x4xf32>
    %40 = vector.shape_cast %39 : vector<1x16x4xf32> to vector<16x4xf32>
    %cst_37 = arith.constant dense<0.000000e+00> : vector<288x4xf32>
    %41 = tpu.matmul %38, %40, %cst_37 {dimension_numbers = #tpu.dot_dimension_numbers<[1], [0], [0], [1], [0, 0, 1, 1], [], []>} : vector<288x16xf32>, vector<16x4xf32>, vector<288x4xf32> -> vector<288x4xf32>
    %42 = arith.addf %36, %41 : vector<288x4xf32>
    %c0_38 = arith.constant 0 : index
    %c37 = arith.constant 37 : index
    %c0_39 = arith.constant 0 : index
    %43 = vector.load %arg1[%c0_38, %c37, %c0_39] : memref<1x342x16xf32, #tpu.memory_space<vmem>>, vector<1x288x16xf32>
    %44 = vector.shape_cast %43 : vector<1x288x16xf32> to vector<288x16xf32>
    %c7 = arith.constant 7 : index
    %c0_40 = arith.constant 0 : index
    %c0_41 = arith.constant 0 : index
    %45 = vector.load %arg2[%c7, %c0_40, %c0_41] : memref<9x16x4xf32, #tpu.memory_space<vmem>>, vector<1x16x4xf32>
    %46 = vector.shape_cast %45 : vector<1x16x4xf32> to vector<16x4xf32>
    %cst_42 = arith.constant dense<0.000000e+00> : vector<288x4xf32>
    %47 = tpu.matmul %44, %46, %cst_42 {dimension_numbers = #tpu.dot_dimension_numbers<[1], [0], [0], [1], [0, 0, 1, 1], [], []>} : vector<288x16xf32>, vector<16x4xf32>, vector<288x4xf32> -> vector<288x4xf32>
    %48 = arith.addf %42, %47 : vector<288x4xf32>
    %c0_43 = arith.constant 0 : index
    %c38 = arith.constant 38 : index
    %c0_44 = arith.constant 0 : index
    %49 = vector.load %arg1[%c0_43, %c38, %c0_44] : memref<1x342x16xf32, #tpu.memory_space<vmem>>, vector<1x288x16xf32>
    %50 = vector.shape_cast %49 : vector<1x288x16xf32> to vector<288x16xf32>
    %c8 = arith.constant 8 : index
    %c0_45 = arith.constant 0 : index
    %c0_46 = arith.constant 0 : index
    %51 = vector.load %arg2[%c8, %c0_45, %c0_46] : memref<9x16x4xf32, #tpu.memory_space<vmem>>, vector<1x16x4xf32>
    %52 = vector.shape_cast %51 : vector<1x16x4xf32> to vector<16x4xf32>
    %cst_47 = arith.constant dense<0.000000e+00> : vector<288x4xf32>
    %53 = tpu.matmul %50, %52, %cst_47 {dimension_numbers = #tpu.dot_dimension_numbers<[1], [0], [0], [1], [0, 0, 1, 1], [], []>} : vector<288x16xf32>, vector<16x4xf32>, vector<288x4xf32> -> vector<288x4xf32>
    %54 = arith.addf %48, %53 : vector<288x4xf32>
    %c0_48 = arith.constant 0 : index
    %c0_49 = arith.constant 0 : index
    %55 = vector.load %arg3[%c0_48, %c0_49] : memref<1x4xf32, #tpu.memory_space<vmem>>, vector<1x4xf32>
    %56 = vector.broadcast %55 : vector<1x4xf32> to vector<288x4xf32>
    %57 = arith.addf %54, %56 : vector<288x4xf32>
    %c0_50 = arith.constant 0 : index
    %c0_51 = arith.constant 0 : index
    %c0_52 = arith.constant 0 : index
    %58 = vector.load %arg4[%c0_50, %c0_51, %c0_52] : memref<1x288x4xf32, #tpu.memory_space<vmem>>, vector<1x288x4xf32>
    %59 = vector.shape_cast %58 : vector<1x288x4xf32> to vector<288x4xf32>
    %60 = vector.shape_cast %57 : vector<288x4xf32> to vector<1x288x4xf32>
    tpu.vector_store %arg4[%c0_50, %c0_51, %c0_52], %60 {strides = array<i32>} : memref<1x288x4xf32, #tpu.memory_space<vmem>>, vector<1x288x4xf32>,
    return
  }
  func.func @transform_0(%arg0: i32) -> (i32, i32, i32) {
    %c0_i32 = arith.constant 0 : i32
    %c0_i32_0 = arith.constant 0 : i32
    %c0_i32_1 = arith.constant 0 : i32
    return %arg0, %c0_i32, %c0_i32_0 : i32, i32, i32
  }
  func.func @transform_1(%arg0: i32) -> (i32, i32, i32) {
    %c0_i32 = arith.constant 0 : i32
    %c0_i32_0 = arith.constant 0 : i32
    %c0_i32_1 = arith.constant 0 : i32
    %c0_i32_2 = arith.constant 0 : i32
    return %c0_i32, %c0_i32_0, %c0_i32_1 : i32, i32, i32
  }
  func.func @transform_2(%arg0: i32) -> (i32, i32) {
    %c0_i32 = arith.constant 0 : i32
    %c0_i32_0 = arith.constant 0 : i32
    %c0_i32_1 = arith.constant 0 : i32
    return %c0_i32, %c0_i32_0 : i32, i32
  }
  func.func @transform_3(%arg0: i32) -> (i32, i32, i32) {
    %c0_i32 = arith.constant 0 : i32
    %c0_i32_0 = arith.constant 0 : i32
    %c0_i32_1 = arith.constant 0 : i32
    return %arg0, %c0_i32, %c0_i32_0 : i32, i32, i32
  }
}

</mosaic_0001>

<llo_original>
// kernel: tpu_custom_call.1
$region0: #{tpu_custom_call.1}
  #allocation0 [shape = 'u32[]', space=smem, size = 0x4, offset = 0x4, fixed_abs, tag = 'smem constant byte address 0x4 - core index']
  #allocation1 [shape = 'u32[72,128]{1,0:T(1,128)}', space=vmem, size = 0x9000, scoped, tag = 'internal scratch']
  %s0 = inlined_call_operand.vmem [shape: f32[2,342,16], index: 0, kind: input, shape index: {}]
  %s1 = inlined_call_operand.vmem [shape: f32[9,16,4], index: 1, kind: input, shape index: {}]
  %s2 = inlined_call_operand.vmem [shape: f32[1,4], index: 2, kind: input, shape index: {}]
  %s3 = inlined_call_operand.vmem [shape: f32[2,288,4], index: 3, kind: output, shape index: {}]
  %s4 = sld [smem:[#allocation0]]
  $region45: #{tpu_custom_call.1} parent=0
    _
  %s6 = ssub.s32 1, %s4
  %s7 = scalar_select 0, %s6, %s4
  loop: start=0, step=1, limit=4
  $region2: #{tpu_custom_call.1} parent=0 // loop_pre_header
    _
  $region3: #{tpu_custom_call.1} parent=0 // loop_header
    %s9 = sphi 0, %s13
    %p10 = scmp.ge.s32.totalorder %s9, 4
    %s19 = sphi 0, %s21
    %s22 = sphi 0, %s19
    %s23 = sphi 0, %s22
    %s39 = sphi 0, %s23
    %s43 = sphi 0, %s43
    %s45 = sphi 0, %s43
    %s46 = sphi 0, %s45
    %s60 = sphi 0, %s46
    %s64 = sphi 0, %s64
    %s66 = sphi 0, %s64
    %s67 = sphi 0, %s66
    %s81 = sphi 0, %s67
    %s87 = sphi 0, %s89
    %s90 = sphi 0, %s87
    %s91 = sphi 0, %s90
    %s107 = sphi 0, %s91
  $region4: #{tpu_custom_call.1} parent=0 // loop_header_branch
    %12 = sbr.rel (%p10) target = $region8
  $region5: #{tpu_custom_call.1} parent=0 // loop_body
    %s14 = ssub.s32 %s9, 1
    %s15 = ssub.s32 %s9, 2
    %s16 = sadd.s32 %s9, 1
    %s17 = ssub.s32 %s9, %s16
    %p18 = scmp.eq.s32.totalorder %s17, 0
    %s20 = sadd.s32 %s19, 1
    %s21 = scalar_select %p18, %s19, %s20
    %p24 = pneg %p18
    %p25 = scmp.eq.s32.totalorder %s9, 1
    %p26 = por %p24, %p25
    %p27 = scmp.ne.s32.totalorder %s19, %s22
    %p28 = scmp.eq.s32.totalorder %s9, 0
    %p29 = por %p27, %p28
    %p30 = scmp.ne.s32.totalorder %s19, %s22
    %p31 = scmp.eq.s32.totalorder %s14, 1
    %p32 = por %p30, %p31
    %p33 = scmp.ne.s32.totalorder %s22, %s23
    %p34 = scmp.eq.s32.totalorder %s14, 0
    %p35 = por %p33, %p34
    %p36 = scmp.ne.s32.totalorder %s22, %s23
    %p37 = scmp.eq.s32.totalorder %s15, 1
    %p38 = por %p36, %p37
    %p40 = scmp.ne.s32.totalorder %s23, %s39
    %p41 = scmp.eq.s32.totalorder %s15, 0
    %p42 = por %p40, %p41
    %s44 = sadd.s32 %s43, 1
    %p47 = scmp.eq.s32.totalorder %s9, 1
    %p48 = scmp.ne.s32.totalorder %s43, %s45
    %p49 = scmp.eq.s32.totalorder %s9, 0
    %p50 = por %p48, %p49
    %p51 = scmp.ne.s32.totalorder %s43, %s45
    %p52 = scmp.eq.s32.totalorder %s14, 1
    %p53 = por %p51, %p52
    %p54 = scmp.ne.s32.totalorder %s45, %s46
    %p55 = scmp.eq.s32.totalorder %s14, 0
    %p56 = por %p54, %p55
    %p57 = scmp.ne.s32.totalorder %s45, %s46
    %p58 = scmp.eq.s32.totalorder %s15, 1
    %p59 = por %p57, %p58
    %p61 = scmp.ne.s32.totalorder %s46, %s60
    %p62 = scmp.eq.s32.totalorder %s15, 0
    %p63 = por %p61, %p62
    %s65 = sadd.s32 %s64, 1
    %p68 = scmp.eq.s32.totalorder %s9, 1
    %p69 = scmp.ne.s32.totalorder %s64, %s66
    %p70 = scmp.eq.s32.totalorder %s9, 0
    %p71 = por %p69, %p70
    %p72 = scmp.ne.s32.totalorder %s64, %s66
    %p73 = scmp.eq.s32.totalorder %s14, 1
    %p74 = por %p72, %p73
    %p75 = scmp.ne.s32.totalorder %s66, %s67
    %p76 = scmp.eq.s32.totalorder %s14, 0
    %p77 = por %p75, %p76
    %p78 = scmp.ne.s32.totalorder %s66, %s67
    %p79 = scmp.eq.s32.totalorder %s15, 1
    %p80 = por %p78, %p79
    %p82 = scmp.ne.s32.totalorder %s67, %s81
    %p83 = scmp.eq.s32.totalorder %s15, 0
    %p84 = por %p82, %p83
    %s85 = ssub.s32 %s9, %s16
    %p86 = scmp.eq.s32.totalorder %s85, 0
    %s88 = sadd.s32 %s87, 1
    %s89 = scalar_select %p86, %s87, %s88
    %p92 = pneg %p86
    %p93 = scmp.eq.s32.totalorder %s9, 1
    %p94 = por %p92, %p93
    %p95 = scmp.ne.s32.totalorder %s87, %s90
    %p96 = scmp.eq.s32.totalorder %s9, 0
    %p97 = por %p95, %p96
    %p98 = scmp.ne.s32.totalorder %s87, %s90
    %p99 = scmp.eq.s32.totalorder %s14, 1
    %p100 = por %p98, %p99
    %p101 = scmp.ne.s32.totalorder %s90, %s91
    %p102 = scmp.eq.s32.totalorder %s14, 0
    %p103 = por %p101, %p102
    %p104 = scmp.ne.s32.totalorder %s90, %s91
    %p105 = scmp.eq.s32.totalorder %s15, 1
    %p106 = por %p104, %p105
    %p108 = scmp.ne.s32.totalorder %s91, %s107
    %p109 = scmp.eq.s32.totalorder %s15, 0
    %p110 = por %p108, %p109
    %p111 = scmp.le.s32.totalorder 1, %s9
    %p112 = scmp.lt.s32.totalorder %s9, 3
    %p113 = pnand %p111, %p112
    %p114 = pneg %p113
    // Predicated region
    $region9: #{tpu_custom_call.1} parent=5 // pred_check
      _
    $region10: #{tpu_custom_call.1} parent=5 // pred_check_branch
      %116 = sbr.rel (%p113) target = $region12
    $region11: #{tpu_custom_call.1} parent=5 // pred_region
      %s117 = ssub.s32 %s9, 1
      // Predicated region
      $region13: #{tpu_custom_call.1} parent=11 // pred_check
        %p118 = pneg %p56
      $region14: #{tpu_custom_call.1} parent=11 // pred_check_branch
        %120 = sbr.rel (%p118) target = $region16
      $region15: #{tpu_custom_call.1} parent=11 // pred_region
        _
      $region16: #{tpu_custom_call.1} parent=11 // pred_fallthru
        _
      // Predicated region
      $region17: #{tpu_custom_call.1} parent=11 // pred_check
        %p121 = pneg %p77
      $region18: #{tpu_custom_call.1} parent=11 // pred_check_branch
        %123 = sbr.rel (%p121) target = $region20
      $region19: #{tpu_custom_call.1} parent=11 // pred_region
        _
      $region20: #{tpu_custom_call.1} parent=11 // pred_fallthru
        _
    $region12: #{tpu_custom_call.1} parent=5 // pred_fallthru
      _
    %p124 = scmp.lt.s32.totalorder %s9, 2
    // Predicated region
    $region21: #{tpu_custom_call.1} parent=5 // pred_check
      %p125 = pneg %p124
    $region22: #{tpu_custom_call.1} parent=5 // pred_check_branch
      %127 = sbr.rel (%p125) target = $region24
    $region23: #{tpu_custom_call.1} parent=5 // pred_region
      // Predicated region
      $region25: #{tpu_custom_call.1} parent=23 // pred_check
        %p128 = pneg %p29
      $region26: #{tpu_custom_call.1} parent=23 // pred_check_branch
        %130 = sbr.rel (%p128) target = $region28
      $region27: #{tpu_custom_call.1} parent=23 // pred_region
        %p131 = scmp.lt.s32.totalorder %s9, 1
        %s132 = scalar_select %p131, %s9, 1
        %s133 = smul.addr %s132, 43
        %s134 = smul.addr %s133, 8
        %s135 = scalar_lea.vmem %s0, %s134
      $region28: #{tpu_custom_call.1} parent=23 // pred_fallthru
        _
    $region24: #{tpu_custom_call.1} parent=5 // pred_fallthru
      _
    %p136 = scmp.le.s32.totalorder 1, %s9
    %p137 = scmp.lt.s32.totalorder %s9, 3
    %p138 = pnand %p136, %p137
    %p139 = pneg %p138
    // Predicated region
    $region29: #{tpu_custom_call.1} parent=5 // pred_check
      _
    $region30: #{tpu_custom_call.1} parent=5 // pred_check_branch
      %141 = sbr.rel (%p138) target = $region32
    $region31: #{tpu_custom_call.1} parent=5 // pred_region
      %s142 = ssub.s32 %s9, 1
      %p143 = scmp.lt.s32.totalorder %s14, 1
      %s144 = scalar_select %p143, %s14, 1
      %s145 = smul.addr %s144, 43
      %s146 = smul.addr %s145, 8
      %s147 = scalar_lea.vmem %s0, %s146
      %p148 = pneg %p35
      %p149 = pneg %p32
      %p150 = pneg %p56
      %p151 = pneg %p53
      %p152 = pneg %p77
      %p153 = pneg %p74
      %p154 = pneg %p103
      %p155 = pneg %p100
      %p156 = scmp.lt.s32.totalorder %s14, 1
      %s157 = scalar_select %p156, %s14, 1
      %s158 = smul.addr %s157, 36
      %s159 = smul.addr %s158, 8
      %s160 = scalar_lea.vmem %s3, %s159
      %p161 = scmp.lt.s32.totalorder %s14, 1
      %s162 = scalar_select %p161, %s14, 1
      %s163 = smul.addr %s162, 43
      %s164 = smul.addr %s163, 8
      %s165 = scalar_lea.vmem %s0, %s164
      %p166 = scmp.lt.s32.totalorder %s14, 1
      %s167 = scalar_select %p166, %s14, 1
      %s168 = smul.addr %s167, 36
      %s169 = smul.addr %s168, 8
      %s170 = scalar_lea.vmem %s3, %s169
      %v171 = vld [vmem:[%s165] sm:$0xff]
      %v172 = vld [vmem:[%s165 + $0x8] sm:$0xff]
      %v173 = vld [vmem:[%s165 + $0x10] sm:$0xff]
      %v174 = vld [vmem:[%s165 + $0x18] sm:$0xff]
      %v175 = vld [vmem:[%s165 + $0x20] sm:$0xff]
      %v176 = vld [vmem:[%s165 + $0x28] sm:$0xff]
      %v177 = vld [vmem:[%s165 + $0x30] sm:$0xff]
      %v178 = vld [vmem:[%s165 + $0x38] sm:$0xff]
      %v179 = vld [vmem:[%s165 + $0x40] sm:$0xff]
      %v180 = vld [vmem:[%s165 + $0x48] sm:$0xff]
      %v181 = vld [vmem:[%s165 + $0x50] sm:$0xff]
      %v182 = vld [vmem:[%s165 + $0x58] sm:$0xff]
      %v183 = vld [vmem:[%s165 + $0x60] sm:$0xff]
      %v184 = vld [vmem:[%s165 + $0x68] sm:$0xff]
      %v185 = vld [vmem:[%s165 + $0x70] sm:$0xff]
      %v186 = vld [vmem:[%s165 + $0x78] sm:$0xff]
      %v187 = vld [vmem:[%s165 + $0x80] sm:$0xff]
      %v188 = vld [vmem:[%s165 + $0x88] sm:$0xff]
      %v189 = vld [vmem:[%s165 + $0x90] sm:$0xff]
      %v190 = vld [vmem:[%s165 + $0x98] sm:$0xff]
      %v191 = vld [vmem:[%s165 + $0xa0] sm:$0xff]
      %v192 = vld [vmem:[%s165 + $0xa8] sm:$0xff]
      %v193 = vld [vmem:[%s165 + $0xb0] sm:$0xff]
      %v194 = vld [vmem:[%s165 + $0xb8] sm:$0xff]
      %v195 = vld [vmem:[%s165 + $0xc0] sm:$0xff]
      %v196 = vld [vmem:[%s165 + $0xc8] sm:$0xff]
      %v197 = vld [vmem:[%s165 + $0xd0] sm:$0xff]
      %v198 = vld [vmem:[%s165 + $0xd8] sm:$0xff]
      %v199 = vld [vmem:[%s165 + $0xe0] sm:$0xff]
      %v200 = vld [vmem:[%s165 + $0xe8] sm:$0xff]
      %v201 = vld [vmem:[%s165 + $0xf0] sm:$0xff]
      %v202 = vld [vmem:[%s165 + $0xf8] sm:$0xff]
      %v203 = vld [vmem:[%s165 + $0x100] sm:$0xff]
      %v204 = vld [vmem:[%s165 + $0x108] sm:$0xff]
      %v205 = vld [vmem:[%s165 + $0x110] sm:$0xff]
      %v206 = vld [vmem:[%s165 + $0x118] sm:$0xff]
      %v207 = vld [vmem:[%s1] sm:$0xff]
      %v208 = vld [vmem:[%s1 + $0x8] sm:$0xff]
      %v209 = vld [vmem:[%s165 + $0x1] sm:$0xff]
      %v210 = vld [vmem:[%s165 + $0x9] sm:$0xff]
      %v211 = vld [vmem:[%s165 + $0x11] sm:$0xff]
      %v212 = vld [vmem:[%s165 + $0x19] sm:$0xff]
      %v213 = vld [vmem:[%s165 + $0x21] sm:$0xff]
      %v214 = vld [vmem:[%s165 + $0x29] sm:$0xff]
      %v215 = vld [vmem:[%s165 + $0x31] sm:$0xff]
      %v216 = vld [vmem:[%s165 + $0x39] sm:$0xff]
      %v217 = vld [vmem:[%s165 + $0x41] sm:$0xff]
      %v218 = vld [vmem:[%s165 + $0x49] sm:$0xff]
      %v219 = vld [vmem:[%s165 + $0x51] sm:$0xff]
      %v220 = vld [vmem:[%s165 + $0x59] sm:$0xff]
      %v221 = vld [vmem:[%s165 + $0x61] sm:$0xff]
      %v222 = vld [vmem:[%s165 + $0x69] sm:$0xff]
      %v223 = vld [vmem:[%s165 + $0x71] sm:$0xff]
      %v224 = vld [vmem:[%s165 + $0x79] sm:$0xff]
      %v225 = vld [vmem:[%s165 + $0x81] sm:$0xff]
      %v226 = vld [vmem:[%s165 + $0x89] sm:$0xff]
      %v227 = vld [vmem:[%s165 + $0x91] sm:$0xff]
      %v228 = vld [vmem:[%s165 + $0x99] sm:$0xff]
      %v229 = vld [vmem:[%s165 + $0xa1] sm:$0xff]
      %v230 = vld [vmem:[%s165 + $0xa9] sm:$0xff]
      %v231 = vld [vmem:[%s165 + $0xb1] sm:$0xff]
      %v232 = vld [vmem:[%s165 + $0xb9] sm:$0xff]
      %v233 = vld [vmem:[%s165 + $0xc1] sm:$0xff]
      %v234 = vld [vmem:[%s165 + $0xc9] sm:$0xff]
      %v235 = vld [vmem:[%s165 + $0xd1] sm:$0xff]
      %v236 = vld [vmem:[%s165 + $0xd9] sm:$0xff]
      %v237 = vld [vmem:[%s165 + $0xe1] sm:$0xff]
      %v238 = vld [vmem:[%s165 + $0xe9] sm:$0xff]
      %v239 = vld [vmem:[%s165 + $0xf1] sm:$0xff]
      %v240 = vld [vmem:[%s165 + $0xf9] sm:$0xff]
      %v241 = vld [vmem:[%s165 + $0x101] sm:$0xff]
      %v242 = vld [vmem:[%s165 + $0x109] sm:$0xff]
      %v243 = vld [vmem:[%s165 + $0x111] sm:$0xff]
      %v244 = vld [vmem:[%s165 + $0x119] sm:$0xff]
      %s245 = scalar_lea.vmem %s1, 16
      %v246 = vld [vmem:[%s245] sm:$0xff]
      %v247 = vld [vmem:[%s245 + $0x8] sm:$0xff]
      %vm248 = vcmask 130048
      %v250 = vsel %vm248, %v209, 0
      %v253 = vsel %vm248, %v210, 0
      %v256 = vsel %vm248, %v211, 0
      %v259 = vsel %vm248, %v212, 0
      %v262 = vsel %vm248, %v213, 0
      %v265 = vsel %vm248, %v214, 0
      %v268 = vsel %vm248, %v215, 0
      %v271 = vsel %vm248, %v216, 0
      %v274 = vsel %vm248, %v217, 0
      %v277 = vsel %vm248, %v218, 0
      %v280 = vsel %vm248, %v219, 0
      %v283 = vsel %vm248, %v220, 0
      %v286 = vsel %vm248, %v221, 0
      %v289 = vsel %vm248, %v222, 0
      %v292 = vsel %vm248, %v223, 0
      %v295 = vsel %vm248, %v224, 0
      %v298 = vsel %vm248, %v225, 0
      %v301 = vsel %vm248, %v226, 0
      %v304 = vsel %vm248, %v227, 0
      %v307 = vsel %vm248, %v228, 0
      %v310 = vsel %vm248, %v229, 0
      %v313 = vsel %vm248, %v230, 0
      %v316 = vsel %vm248, %v231, 0
      %v319 = vsel %vm248, %v232, 0
      %v322 = vsel %vm248, %v233, 0
      %v325 = vsel %vm248, %v234, 0
      %v328 = vsel %vm248, %v235, 0
      %v331 = vsel %vm248, %v236, 0
      %v334 = vsel %vm248, %v237, 0
      %v337 = vsel %vm248, %v238, 0
      %v340 = vsel %vm248, %v239, 0
      %v343 = vsel %vm248, %v240, 0
      %v346 = vsel %vm248, %v241, 0
      %v349 = vsel %vm248, %v242, 0
      %v352 = vsel %vm248, %v243, 0
      %v355 = vsel %vm248, %v244, 0
      %357 = vmatpush.msra.mxu0 0.0
      %358 = vmatpush.msra.mxu0 0.0
      %359 = vmatpush.msra.mxu0 0.0
      %360 = vmatpush.msra.mxu0 0.0
      %361 = vmatpush.msra.mxu0 0.0
      %362 = vmatpush.msra.mxu0 0.0
      %363 = vmatpush.msra.mxu0 0.0
      %364 = vmatpush.msra.mxu0 0.0
      %365 = vmatpush.msra.mxu0 0.0
      %366 = vmatpush.msra.mxu0 0.0
      %367 = vmatpush.msra.mxu0 0.0
      %368 = vmatpush.msra.mxu0 0.0
      %369 = vmatpush.msra.mxu0 0.0
      %370 = vmatpush.msra.mxu0 0.0
      %371 = vmatpush.msra.mxu0 %v247
      %372 = vmatpush.msra.mxu0 %v246
      %373 = vmatmul.f32.gmra.mxu0 %v250
      %v374 = vpop.f32.mrf.mxu0
      %v375 = vadd.f32 0.0, %v374
      %376 = vmatmul.f32.gmra.mxu0 %v253
      %v377 = vpop.f32.mrf.mxu0
      %v378 = vadd.f32 0.0, %v377
      %379 = vmatmul.f32.gmra.mxu0 %v256
      %v380 = vpop.f32.mrf.mxu0
      %v381 = vadd.f32 0.0, %v380
      %382 = vmatmul.f32.gmra.mxu0 %v259
      %v383 = vpop.f32.mrf.mxu0
      %v384 = vadd.f32 0.0, %v383
      %385 = vmatmul.f32.gmra.mxu0 %v262
      %v386 = vpop.f32.mrf.mxu0
      %v387 = vadd.f32 0.0, %v386
      %388 = vmatmul.f32.gmra.mxu0 %v265
      %v389 = vpop.f32.mrf.mxu0
      %v390 = vadd.f32 0.0, %v389
      %391 = vmatmul.f32.gmra.mxu0 %v268
      %v392 = vpop.f32.mrf.mxu0
      %v393 = vadd.f32 0.0, %v392
      %394 = vmatmul.f32.gmra.mxu0 %v271
      %v395 = vpop.f32.mrf.mxu0
      %v396 = vadd.f32 0.0, %v395
      %397 = vmatmul.f32.gmra.mxu0 %v274
      %v398 = vpop.f32.mrf.mxu0
      %v399 = vadd.f32 0.0, %v398
      %400 = vmatmul.f32.gmra.mxu0 %v277
      %v401 = vpop.f32.mrf.mxu0
      %v402 = vadd.f32 0.0, %v401
      %403 = vmatmul.f32.gmra.mxu0 %v280
      %v404 = vpop.f32.mrf.mxu0
      %v405 = vadd.f32 0.0, %v404
      %406 = vmatmul.f32.gmra.mxu0 %v283
      %v407 = vpop.f32.mrf.mxu0
      %v408 = vadd.f32 0.0, %v407
      %409 = vmatmul.f32.gmra.mxu0 %v286
      %v410 = vpop.f32.mrf.mxu0
      %v411 = vadd.f32 0.0, %v410
      %412 = vmatmul.f32.gmra.mxu0 %v289
      %v413 = vpop.f32.mrf.mxu0
      %v414 = vadd.f32 0.0, %v413
      %415 = vmatmul.f32.gmra.mxu0 %v292
      %v416 = vpop.f32.mrf.mxu0
      %v417 = vadd.f32 0.0, %v416
      %418 = vmatmul.f32.gmra.mxu0 %v295
      %v419 = vpop.f32.mrf.mxu0
      %v420 = vadd.f32 0.0, %v419
      %421 = vmatmul.f32.gmra.mxu0 %v298
      %v422 = vpop.f32.mrf.mxu0
      %v423 = vadd.f32 0.0, %v422
      %424 = vmatmul.f32.gmra.mxu0 %v301
      %v425 = vpop.f32.mrf.mxu0
      %v426 = vadd.f32 0.0, %v425
      %427 = vmatmul.f32.gmra.mxu0 %v304
      %v428 = vpop.f32.mrf.mxu0
      %v429 = vadd.f32 0.0, %v428
      %430 = vmatmul.f32.gmra.mxu0 %v307
      %v431 = vpop.f32.mrf.mxu0
      %v432 = vadd.f32 0.0, %v431
      %433 = vmatmul.f32.gmra.mxu0 %v310
      %v434 = vpop.f32.mrf.mxu0
      %v435 = vadd.f32 0.0, %v434
      %436 = vmatmul.f32.gmra.mxu0 %v313
      %v437 = vpop.f32.mrf.mxu0
      %v438 = vadd.f32 0.0, %v437
      %439 = vmatmul.f32.gmra.mxu0 %v316
      %v440 = vpop.f32.mrf.mxu0
      %v441 = vadd.f32 0.0, %v440
      %442 = vmatmul.f32.gmra.mxu0 %v319
      %v443 = vpop.f32.mrf.mxu0
      %v444 = vadd.f32 0.0, %v443
      %445 = vmatmul.f32.gmra.mxu0 %v322
      %v446 = vpop.f32.mrf.mxu0
      %v447 = vadd.f32 0.0, %v446
      %448 = vmatmul.f32.gmra.mxu0 %v325
      %v449 = vpop.f32.mrf.mxu0
      %v450 = vadd.f32 0.0, %v449
      %451 = vmatmul.f32.gmra.mxu0 %v328
      %v452 = vpop.f32.mrf.mxu0
      %v453 = vadd.f32 0.0, %v452
      %454 = vmatmul.f32.gmra.mxu0 %v331
      %v455 = vpop.f32.mrf.mxu0
      %v456 = vadd.f32 0.0, %v455
      %457 = vmatmul.f32.gmra.mxu0 %v334
      %v458 = vpop.f32.mrf.mxu0
      %v459 = vadd.f32 0.0, %v458
      %460 = vmatmul.f32.gmra.mxu0 %v337
      %v461 = vpop.f32.mrf.mxu0
      %v462 = vadd.f32 0.0, %v461
      %463 = vmatmul.f32.gmra.mxu0 %v340
      %v464 = vpop.f32.mrf.mxu0
      %v465 = vadd.f32 0.0, %v464
      %466 = vmatmul.f32.gmra.mxu0 %v343
      %v467 = vpop.f32.mrf.mxu0
      %v468 = vadd.f32 0.0, %v467
      %469 = vmatmul.f32.gmra.mxu0 %v346
      %v470 = vpop.f32.mrf.mxu0
      %v471 = vadd.f32 0.0, %v470
      %472 = vmatmul.f32.gmra.mxu0 %v349
      %v473 = vpop.f32.mrf.mxu0
      %v474 = vadd.f32 0.0, %v473
      %475 = vmatmul.f32.gmra.mxu0 %v352
      %v476 = vpop.f32.mrf.mxu0
      %v477 = vadd.f32 0.0, %v476
      %478 = vmatmul.f32.gmra.mxu0 %v355
      %v479 = vpop.f32.mrf.mxu0
      %v480 = vadd.f32 0.0, %v479
      %481 = vdwg.mxu0
      %v483 = vsel %vm248, %v171, 0
      %v486 = vsel %vm248, %v172, 0
      %v489 = vsel %vm248, %v173, 0
      %v492 = vsel %vm248, %v174, 0
      %v495 = vsel %vm248, %v175, 0
      %v498 = vsel %vm248, %v176, 0
      %v501 = vsel %vm248, %v177, 0
      %v504 = vsel %vm248, %v178, 0
      %v507 = vsel %vm248, %v179, 0
      %v510 = vsel %vm248, %v180, 0
      %v513 = vsel %vm248, %v181, 0
      %v516 = vsel %vm248, %v182, 0
      %v519 = vsel %vm248, %v183, 0
      %v522 = vsel %vm248, %v184, 0
      %v525 = vsel %vm248, %v185, 0
      %v528 = vsel %vm248, %v186, 0
      %v531 = vsel %vm248, %v187, 0
      %v534 = vsel %vm248, %v188, 0
      %v537 = vsel %vm248, %v189, 0
      %v540 = vsel %vm248, %v190, 0
      %v543 = vsel %vm248, %v191, 0
      %v546 = vsel %vm248, %v192, 0
      %v549 = vsel %vm248, %v193, 0
      %v552 = vsel %vm248, %v194, 0
      %v555 = vsel %vm248, %v195, 0
      %v558 = vsel %vm248, %v196, 0
      %v561 = vsel %vm248, %v197, 0
      %v564 = vsel %vm248, %v198, 0
      %v567 = vsel %vm248, %v199, 0
      %v570 = vsel %vm248, %v200, 0
      %v573 = vsel %vm248, %v201, 0
      %v576 = vsel %vm248, %v202, 0
      %v579 = vsel %vm248, %v203, 0
      %v582 = vsel %vm248, %v204, 0
      %v585 = vsel %vm248, %v205, 0
      %v588 = vsel %vm248, %v206, 0
      %590 = vmatpush.msra.mxu0 0.0
      %591 = vmatpush.msra.mxu0 0.0
      %592 = vmatpush.msra.mxu0 0.0
      %593 = vmatpush.msra.mxu0 0.0
      %594 = vmatpush.msra.mxu0 0.0
      %595 = vmatpush.msra.mxu0 0.0
      %596 = vmatpush.msra.mxu0 0.0
      %597 = vmatpush.msra.mxu0 0.0
      %598 = vmatpush.msra.mxu0 0.0
      %599 = vmatpush.msra.mxu0 0.0
      %600 = vmatpush.msra.mxu0 0.0
      %601 = vmatpush.msra.mxu0 0.0
      %602 = vmatpush.msra.mxu0 0.0
      %603 = vmatpush.msra.mxu0 0.0
      %604 = vmatpush.msra.mxu0 %v208
      %605 = vmatpush.msra.mxu0 %v207
      %606 = vmatmul.f32.gmra.mxu0 %v483
      %v607 = vpop.f32.mrf.mxu0
      %v608 = vadd.f32 %v375, %v607
      %609 = vmatmul.f32.gmra.mxu0 %v486
      %v610 = vpop.f32.mrf.mxu0
      %v611 = vadd.f32 %v378, %v610
      %612 = vmatmul.f32.gmra.mxu0 %v489
      %v613 = vpop.f32.mrf.mxu0
      %v614 = vadd.f32 %v381, %v613
      %615 = vmatmul.f32.gmra.mxu0 %v492
      %v616 = vpop.f32.mrf.mxu0
      %v617 = vadd.f32 %v384, %v616
      %618 = vmatmul.f32.gmra.mxu0 %v495
      %v619 = vpop.f32.mrf.mxu0
      %v620 = vadd.f32 %v387, %v619
      %621 = vmatmul.f32.gmra.mxu0 %v498
      %v622 = vpop.f32.mrf.mxu0
      %v623 = vadd.f32 %v390, %v622
      %624 = vmatmul.f32.gmra.mxu0 %v501
      %v625 = vpop.f32.mrf.mxu0
      %v626 = vadd.f32 %v393, %v625
      %627 = vmatmul.f32.gmra.mxu0 %v504
      %v628 = vpop.f32.mrf.mxu0
      %v629 = vadd.f32 %v396, %v628
      %630 = vmatmul.f32.gmra.mxu0 %v507
      %v631 = vpop.f32.mrf.mxu0
      %v632 = vadd.f32 %v399, %v631
      %633 = vmatmul.f32.gmra.mxu0 %v510
      %v634 = vpop.f32.mrf.mxu0
      %v635 = vadd.f32 %v402, %v634
      %636 = vmatmul.f32.gmra.mxu0 %v513
      %v637 = vpop.f32.mrf.mxu0
      %v638 = vadd.f32 %v405, %v637
      %639 = vmatmul.f32.gmra.mxu0 %v516
      %v640 = vpop.f32.mrf.mxu0
      %v641 = vadd.f32 %v408, %v640
      %642 = vmatmul.f32.gmra.mxu0 %v519
      %v643 = vpop.f32.mrf.mxu0
      %v644 = vadd.f32 %v411, %v643
      %645 = vmatmul.f32.gmra.mxu0 %v522
      %v646 = vpop.f32.mrf.mxu0
      %v647 = vadd.f32 %v414, %v646
      %648 = vmatmul.f32.gmra.mxu0 %v525
      %v649 = vpop.f32.mrf.mxu0
      %v650 = vadd.f32 %v417, %v649
      %651 = vmatmul.f32.gmra.mxu0 %v528
      %v652 = vpop.f32.mrf.mxu0
      %v653 = vadd.f32 %v420, %v652
      %654 = vmatmul.f32.gmra.mxu0 %v531
      %v655 = vpop.f32.mrf.mxu0
      %v656 = vadd.f32 %v423, %v655
      %657 = vmatmul.f32.gmra.mxu0 %v534
      %v658 = vpop.f32.mrf.mxu0
      %v659 = vadd.f32 %v426, %v658
      %660 = vmatmul.f32.gmra.mxu0 %v537
      %v661 = vpop.f32.mrf.mxu0
      %v662 = vadd.f32 %v429, %v661
      %663 = vmatmul.f32.gmra.mxu0 %v540
      %v664 = vpop.f32.mrf.mxu0
      %v665 = vadd.f32 %v432, %v664
      %666 = vmatmul.f32.gmra.mxu0 %v543
      %v667 = vpop.f32.mrf.mxu0
      %v668 = vadd.f32 %v435, %v667
      %669 = vmatmul.f32.gmra.mxu0 %v546
      %v670 = vpop.f32.mrf.mxu0
      %v671 = vadd.f32 %v438, %v670
      %672 = vmatmul.f32.gmra.mxu0 %v549
      %v673 = vpop.f32.mrf.mxu0
      %v674 = vadd.f32 %v441, %v673
      %675 = vmatmul.f32.gmra.mxu0 %v552
      %v676 = vpop.f32.mrf.mxu0
      %v677 = vadd.f32 %v444, %v676
      %678 = vmatmul.f32.gmra.mxu0 %v555
      %v679 = vpop.f32.mrf.mxu0
      %v680 = vadd.f32 %v447, %v679
      %681 = vmatmul.f32.gmra.mxu0 %v558
      %v682 = vpop.f32.mrf.mxu0
      %v683 = vadd.f32 %v450, %v682
      %684 = vmatmul.f32.gmra.mxu0 %v561
      %v685 = vpop.f32.mrf.mxu0
      %v686 = vadd.f32 %v453, %v685
      %687 = vmatmul.f32.gmra.mxu0 %v564
      %v688 = vpop.f32.mrf.mxu0
      %v689 = vadd.f32 %v456, %v688
      %690 = vmatmul.f32.gmra.mxu0 %v567
      %v691 = vpop.f32.mrf.mxu0
      %v692 = vadd.f32 %v459, %v691
      %693 = vmatmul.f32.gmra.mxu0 %v570
      %v694 = vpop.f32.mrf.mxu0
      %v695 = vadd.f32 %v462, %v694
      %696 = vmatmul.f32.gmra.mxu0 %v573
      %v697 = vpop.f32.mrf.mxu0
      %v698 = vadd.f32 %v465, %v697
      %699 = vmatmul.f32.gmra.mxu0 %v576
      %v700 = vpop.f32.mrf.mxu0
      %v701 = vadd.f32 %v468, %v700
      %702 = vmatmul.f32.gmra.mxu0 %v579
      %v703 = vpop.f32.mrf.mxu0
      %v704 = vadd.f32 %v471, %v703
      %705 = vmatmul.f32.gmra.mxu0 %v582
      %v706 = vpop.f32.mrf.mxu0
      %v707 = vadd.f32 %v474, %v706
      %708 = vmatmul.f32.gmra.mxu0 %v585
      %v709 = vpop.f32.mrf.mxu0
      %v710 = vadd.f32 %v477, %v709
      %711 = vmatmul.f32.gmra.mxu0 %v588
      %v712 = vpop.f32.mrf.mxu0
      %v713 = vadd.f32 %v480, %v712
      %714 = vdwg.mxu0
      %v715 = vld [vmem:[%s165 + $0x2] sm:$0xff]
      %v716 = vld [vmem:[%s165 + $0xa] sm:$0xff]
      %v717 = vld [vmem:[%s165 + $0x12] sm:$0xff]
      %v718 = vld [vmem:[%s165 + $0x1a] sm:$0xff]
      %v719 = vld [vmem:[%s165 + $0x22] sm:$0xff]
      %v720 = vld [vmem:[%s165 + $0x2a] sm:$0xff]
      %v721 = vld [vmem:[%s165 + $0x32] sm:$0xff]
      %v722 = vld [vmem:[%s165 + $0x3a] sm:$0xff]
      %v723 = vld [vmem:[%s165 + $0x42] sm:$0xff]
      %v724 = vld [vmem:[%s165 + $0x4a] sm:$0xff]
      %v725 = vld [vmem:[%s165 + $0x52] sm:$0xff]
      %v726 = vld [vmem:[%s165 + $0x5a] sm:$0xff]
      %v727 = vld [vmem:[%s165 + $0x62] sm:$0xff]
      %v728 = vld [vmem:[%s165 + $0x6a] sm:$0xff]
      %v729 = vld [vmem:[%s165 + $0x72] sm:$0xff]
      %v730 = vld [vmem:[%s165 + $0x7a] sm:$0xff]
      %v731 = vld [vmem:[%s165 + $0x82] sm:$0xff]
      %v732 = vld [vmem:[%s165 + $0x8a] sm:$0xff]
      %v733 = vld [vmem:[%s165 + $0x92] sm:$0xff]
      %v734 = vld [vmem:[%s165 + $0x9a] sm:$0xff]
      %v735 = vld [vmem:[%s165 + $0xa2] sm:$0xff]
      %v736 = vld [vmem:[%s165 + $0xaa] sm:$0xff]
      %v737 = vld [vmem:[%s165 + $0xb2] sm:$0xff]
      %v738 = vld [vmem:[%s165 + $0xba] sm:$0xff]
      %v739 = vld [vmem:[%s165 + $0xc2] sm:$0xff]
      %v740 = vld [vmem:[%s165 + $0xca] sm:$0xff]
      %v741 = vld [vmem:[%s165 + $0xd2] sm:$0xff]
      %v742 = vld [vmem:[%s165 + $0xda] sm:$0xff]
      %v743 = vld [vmem:[%s165 + $0xe2] sm:$0xff]
      %v744 = vld [vmem:[%s165 + $0xea] sm:$0xff]
      %v745 = vld [vmem:[%s165 + $0xf2] sm:$0xff]
      %v746 = vld [vmem:[%s165 + $0xfa] sm:$0xff]
      %v747 = vld [vmem:[%s165 + $0x102] sm:$0xff]
      %v748 = vld [vmem:[%s165 + $0x10a] sm:$0xff]
      %v749 = vld [vmem:[%s165 + $0x112] sm:$0xff]
      %v750 = vld [vmem:[%s165 + $0x11a] sm:$0xff]
      %s751 = scalar_lea.vmem %s1, 32
      %v752 = vld [vmem:[%s751] sm:$0xff]
      %v753 = vld [vmem:[%s751 + $0x8] sm:$0xff]
      %v755 = vsel %vm248, %v715, 0
      %v758 = vsel %vm248, %v716, 0
      %v761 = vsel %vm248, %v717, 0
      %v764 = vsel %vm248, %v718, 0
      %v767 = vsel %vm248, %v719, 0
      %v770 = vsel %vm248, %v720, 0
      %v773 = vsel %vm248, %v721, 0
      %v776 = vsel %vm248, %v722, 0
      %v779 = vsel %vm248, %v723, 0
      %v782 = vsel %vm248, %v724, 0
      %v785 = vsel %vm248, %v725, 0
      %v788 = vsel %vm248, %v726, 0
      %v791 = vsel %vm248, %v727, 0
      %v794 = vsel %vm248, %v728, 0
      %v797 = vsel %vm248, %v729, 0
      %v800 = vsel %vm248, %v730, 0
      %v803 = vsel %vm248, %v731, 0
      %v806 = vsel %vm248, %v732, 0
      %v809 = vsel %vm248, %v733, 0
      %v812 = vsel %vm248, %v734, 0
      %v815 = vsel %vm248, %v735, 0
      %v818 = vsel %vm248, %v736, 0
      %v821 = vsel %vm248, %v737, 0
      %v824 = vsel %vm248, %v738, 0
      %v827 = vsel %vm248, %v739, 0
      %v830 = vsel %vm248, %v740, 0
      %v833 = vsel %vm248, %v741, 0
      %v836 = vsel %vm248, %v742, 0
      %v839 = vsel %vm248, %v743, 0
      %v842 = vsel %vm248, %v744, 0
      %v845 = vsel %vm248, %v745, 0
      %v848 = vsel %vm248, %v746, 0
      %v851 = vsel %vm248, %v747, 0
      %v854 = vsel %vm248, %v748, 0
      %v857 = vsel %vm248, %v749, 0
      %v860 = vsel %vm248, %v750, 0
      %862 = vmatpush.msra.mxu0 0.0
      %863 = vmatpush.msra.mxu0 0.0
      %864 = vmatpush.msra.mxu0 0.0
      %865 = vmatpush.msra.mxu0 0.0
      %866 = vmatpush.msra.mxu0 0.0
      %867 = vmatpush.msra.mxu0 0.0
      %868 = vmatpush.msra.mxu0 0.0
      %869 = vmatpush.msra.mxu0 0.0
      %870 = vmatpush.msra.mxu0 0.0
      %871 = vmatpush.msra.mxu0 0.0
      %872 = vmatpush.msra.mxu0 0.0
      %873 = vmatpush.msra.mxu0 0.0
      %874 = vmatpush.msra.mxu0 0.0
      %875 = vmatpush.msra.mxu0 0.0
      %876 = vmatpush.msra.mxu0 %v753
      %877 = vmatpush.msra.mxu0 %v752
      %878 = vmatmul.f32.gmra.mxu0 %v755
      %v879 = vpop.f32.mrf.mxu0
      %v880 = vadd.f32 0.0, %v879
      %881 = vmatmul.f32.gmra.mxu0 %v758
      %v882 = vpop.f32.mrf.mxu0
      %v883 = vadd.f32 0.0, %v882
      %884 = vmatmul.f32.gmra.mxu0 %v761
      %v885 = vpop.f32.mrf.mxu0
      %v886 = vadd.f32 0.0, %v885
      %887 = vmatmul.f32.gmra.mxu0 %v764
      %v888 = vpop.f32.mrf.mxu0
      %v889 = vadd.f32 0.0, %v888
      %890 = vmatmul.f32.gmra.mxu0 %v767
      %v891 = vpop.f32.mrf.mxu0
      %v892 = vadd.f32 0.0, %v891
      %893 = vmatmul.f32.gmra.mxu0 %v770
      %v894 = vpop.f32.mrf.mxu0
      %v895 = vadd.f32 0.0, %v894
      %896 = vmatmul.f32.gmra.mxu0 %v773
      %v897 = vpop.f32.mrf.mxu0
      %v898 = vadd.f32 0.0, %v897
      %899 = vmatmul.f32.gmra.mxu0 %v776
      %v900 = vpop.f32.mrf.mxu0
      %v901 = vadd.f32 0.0, %v900
      %902 = vmatmul.f32.gmra.mxu0 %v779
      %v903 = vpop.f32.mrf.mxu0
      %v904 = vadd.f32 0.0, %v903
      %905 = vmatmul.f32.gmra.mxu0 %v782
      %v906 = vpop.f32.mrf.mxu0
      %v907 = vadd.f32 0.0, %v906
      %908 = vmatmul.f32.gmra.mxu0 %v785
      %v909 = vpop.f32.mrf.mxu0
      %v910 = vadd.f32 0.0, %v909
      %911 = vmatmul.f32.gmra.mxu0 %v788
      %v912 = vpop.f32.mrf.mxu0
      %v913 = vadd.f32 0.0, %v912
      %914 = vmatmul.f32.gmra.mxu0 %v791
      %v915 = vpop.f32.mrf.mxu0
      %v916 = vadd.f32 0.0, %v915
      %917 = vmatmul.f32.gmra.mxu0 %v794
      %v918 = vpop.f32.mrf.mxu0
      %v919 = vadd.f32 0.0, %v918
      %920 = vmatmul.f32.gmra.mxu0 %v797
      %v921 = vpop.f32.mrf.mxu0
      %v922 = vadd.f32 0.0, %v921
      %923 = vmatmul.f32.gmra.mxu0 %v800
      %v924 = vpop.f32.mrf.mxu0
      %v925 = vadd.f32 0.0, %v924
      %926 = vmatmul.f32.gmra.mxu0 %v803
      %v927 = vpop.f32.mrf.mxu0
      %v928 = vadd.f32 0.0, %v927
      %929 = vmatmul.f32.gmra.mxu0 %v806
      %v930 = vpop.f32.mrf.mxu0
      %v931 = vadd.f32 0.0, %v930
      %932 = vmatmul.f32.gmra.mxu0 %v809
      %v933 = vpop.f32.mrf.mxu0
      %v934 = vadd.f32 0.0, %v933
      %935 = vmatmul.f32.gmra.mxu0 %v812
      %v936 = vpop.f32.mrf.mxu0
      %v937 = vadd.f32 0.0, %v936
      %938 = vmatmul.f32.gmra.mxu0 %v815
      %v939 = vpop.f32.mrf.mxu0
      %v940 = vadd.f32 0.0, %v939
      %941 = vmatmul.f32.gmra.mxu0 %v818
      %v942 = vpop.f32.mrf.mxu0
      %v943 = vadd.f32 0.0, %v942
      %944 = vmatmul.f32.gmra.mxu0 %v821
      %v945 = vpop.f32.mrf.mxu0
      %v946 = vadd.f32 0.0, %v945
      %947 = vmatmul.f32.gmra.mxu0 %v824
      %v948 = vpop.f32.mrf.mxu0
      %v949 = vadd.f32 0.0, %v948
      %950 = vmatmul.f32.gmra.mxu0 %v827
      %v951 = vpop.f32.mrf.mxu0
      %v952 = vadd.f32 0.0, %v951
      %953 = vmatmul.f32.gmra.mxu0 %v830
      %v954 = vpop.f32.mrf.mxu0
      %v955 = vadd.f32 0.0, %v954
      %956 = vmatmul.f32.gmra.mxu0 %v833
      %v957 = vpop.f32.mrf.mxu0
      %v958 = vadd.f32 0.0, %v957
      %959 = vmatmul.f32.gmra.mxu0 %v836
      %v960 = vpop.f32.mrf.mxu0
      %v961 = vadd.f32 0.0, %v960
      %962 = vmatmul.f32.gmra.mxu0 %v839
      %v963 = vpop.f32.mrf.mxu0
      %v964 = vadd.f32 0.0, %v963
      %965 = vmatmul.f32.gmra.mxu0 %v842
      %v966 = vpop.f32.mrf.mxu0
      %v967 = vadd.f32 0.0, %v966
      %968 = vmatmul.f32.gmra.mxu0 %v845
      %v969 = vpop.f32.mrf.mxu0
      %v970 = vadd.f32 0.0, %v969
      %971 = vmatmul.f32.gmra.mxu0 %v848
      %v972 = vpop.f32.mrf.mxu0
      %v973 = vadd.f32 0.0, %v972
      %974 = vmatmul.f32.gmra.mxu0 %v851
      %v975 = vpop.f32.mrf.mxu0
      %v976 = vadd.f32 0.0, %v975
      %977 = vmatmul.f32.gmra.mxu0 %v854
      %v978 = vpop.f32.mrf.mxu0
      %v979 = vadd.f32 0.0, %v978
      %980 = vmatmul.f32.gmra.mxu0 %v857
      %v981 = vpop.f32.mrf.mxu0
      %v982 = vadd.f32 0.0, %v981
      %983 = vmatmul.f32.gmra.mxu0 %v860
      %v984 = vpop.f32.mrf.mxu0
      %v985 = vadd.f32 0.0, %v984
      %986 = vdwg.mxu0
      %v987 = vadd.f32 %v608, %v880
      %v988 = vadd.f32 %v611, %v883
      %v989 = vadd.f32 %v614, %v886
      %v990 = vadd.f32 %v617, %v889
      %v991 = vadd.f32 %v620, %v892
      %v992 = vadd.f32 %v623, %v895
      %v993 = vadd.f32 %v626, %v898
      %v994 = vadd.f32 %v629, %v901
      %v995 = vadd.f32 %v632, %v904
      %v996 = vadd.f32 %v635, %v907
      %v997 = vadd.f32 %v638, %v910
      %v998 = vadd.f32 %v641, %v913
      %v999 = vadd.f32 %v644, %v916
      %v1000 = vadd.f32 %v647, %v919
      %v1001 = vadd.f32 %v650, %v922
      %v1002 = vadd.f32 %v653, %v925
      %v1003 = vadd.f32 %v656, %v928
      %v1004 = vadd.f32 %v659, %v931
      %v1005 = vadd.f32 %v662, %v934
      %v1006 = vadd.f32 %v665, %v937
      %v1007 = vadd.f32 %v668, %v940
      %v1008 = vadd.f32 %v671, %v943
      %v1009 = vadd.f32 %v674, %v946
      %v1010 = vadd.f32 %v677, %v949
      %v1011 = vadd.f32 %v680, %v952
      %v1012 = vadd.f32 %v683, %v955
      %v1013 = vadd.f32 %v686, %v958
      %v1014 = vadd.f32 %v689, %v961
      %v1015 = vadd.f32 %v692, %v964
      %v1016 = vadd.f32 %v695, %v967
      %v1017 = vadd.f32 %v698, %v970
      %v1018 = vadd.f32 %v701, %v973
      %v1019 = vadd.f32 %v704, %v976
      %v1020 = vadd.f32 %v707, %v979
      %v1021 = vadd.f32 %v710, %v982
      %v1022 = vadd.f32 %v713, %v985
      %v1023 = vld [vmem:[%s165 + $0x12] sm:$0xff]
      %v1024 = vld [vmem:[%s165 + $0x1a] sm:$0xff]
      %v1025 = vld [vmem:[%s165 + $0x22] sm:$0xff]
      %v1026 = vld [vmem:[%s165 + $0x2a] sm:$0xff]
      %v1027 = vld [vmem:[%s165 + $0x32] sm:$0xff]
      %v1028 = vld [vmem:[%s165 + $0x3a] sm:$0xff]
      %v1029 = vld [vmem:[%s165 + $0x42] sm:$0xff]
      %v1030 = vld [vmem:[%s165 + $0x4a] sm:$0xff]
      %v1031 = vld [vmem:[%s165 + $0x52] sm:$0xff]
      %v1032 = vld [vmem:[%s165 + $0x5a] sm:$0xff]
      %v1033 = vld [vmem:[%s165 + $0x62] sm:$0xff]
      %v1034 = vld [vmem:[%s165 + $0x6a] sm:$0xff]
      %v1035 = vld [vmem:[%s165 + $0x72] sm:$0xff]
      %v1036 = vld [vmem:[%s165 + $0x7a] sm:$0xff]
      %v1037 = vld [vmem:[%s165 + $0x82] sm:$0xff]
      %v1038 = vld [vmem:[%s165 + $0x8a] sm:$0xff]
      %v1039 = vld [vmem:[%s165 + $0x92] sm:$0xff]
      %v1040 = vld [vmem:[%s165 + $0x9a] sm:$0xff]
      %v1041 = vld [vmem:[%s165 + $0xa2] sm:$0xff]
      %v1042 = vld [vmem:[%s165 + $0xaa] sm:$0xff]
      %v1043 = vld [vmem:[%s165 + $0xb2] sm:$0xff]
      %v1044 = vld [vmem:[%s165 + $0xba] sm:$0xff]
      %v1045 = vld [vmem:[%s165 + $0xc2] sm:$0xff]
      %v1046 = vld [vmem:[%s165 + $0xca] sm:$0xff]
      %v1047 = vld [vmem:[%s165 + $0xd2] sm:$0xff]
      %v1048 = vld [vmem:[%s165 + $0xda] sm:$0xff]
      %v1049 = vld [vmem:[%s165 + $0xe2] sm:$0xff]
      %v1050 = vld [vmem:[%s165 + $0xea] sm:$0xff]
      %v1051 = vld [vmem:[%s165 + $0xf2] sm:$0xff]
      %v1052 = vld [vmem:[%s165 + $0xfa] sm:$0xff]
      %v1053 = vld [vmem:[%s165 + $0x102] sm:$0xff]
      %v1054 = vld [vmem:[%s165 + $0x10a] sm:$0xff]
      %v1055 = vld [vmem:[%s165 + $0x112] sm:$0xff]
      %v1056 = vld [vmem:[%s165 + $0x11a] sm:$0xff]
      %v1057 = vld [vmem:[%s165 + $0x122] sm:$0xff]
      %v1058 = vld [vmem:[%s165 + $0x12a] sm:$0xff]
      %s1059 = scalar_lea.vmem %s1, 48
      %v1060 = vld [vmem:[%s1059] sm:$0xff]
      %v1061 = vld [vmem:[%s1059 + $0x8] sm:$0xff]
      %v1063 = vsel %vm248, %v1023, 0
      %v1066 = vsel %vm248, %v1024, 0
      %v1069 = vsel %vm248, %v1025, 0
      %v1072 = vsel %vm248, %v1026, 0
      %v1075 = vsel %vm248, %v1027, 0
      %v1078 = vsel %vm248, %v1028, 0
      %v1081 = vsel %vm248, %v1029, 0
      %v1084 = vsel %vm248, %v1030, 0
      %v1087 = vsel %vm248, %v1031, 0
      %v1090 = vsel %vm248, %v1032, 0
      %v1093 = vsel %vm248, %v1033, 0
      %v1096 = vsel %vm248, %v1034, 0
      %v1099 = vsel %vm248, %v1035, 0
      %v1102 = vsel %vm248, %v1036, 0
      %v1105 = vsel %vm248, %v1037, 0
      %v1108 = vsel %vm248, %v1038, 0
      %v1111 = vsel %vm248, %v1039, 0
      %v1114 = vsel %vm248, %v1040, 0
      %v1117 = vsel %vm248, %v1041, 0
      %v1120 = vsel %vm248, %v1042, 0
      %v1123 = vsel %vm248, %v1043, 0
      %v1126 = vsel %vm248, %v1044, 0
      %v1129 = vsel %vm248, %v1045, 0
      %v1132 = vsel %vm248, %v1046, 0
      %v1135 = vsel %vm248, %v1047, 0
      %v1138 = vsel %vm248, %v1048, 0
      %v1141 = vsel %vm248, %v1049, 0
      %v1144 = vsel %vm248, %v1050, 0
      %v1147 = vsel %vm248, %v1051, 0
      %v1150 = vsel %vm248, %v1052, 0
      %v1153 = vsel %vm248, %v1053, 0
      %v1156 = vsel %vm248, %v1054, 0
      %v1159 = vsel %vm248, %v1055, 0
      %v1162 = vsel %vm248, %v1056, 0
      %v1165 = vsel %vm248, %v1057, 0
      %v1168 = vsel %vm248, %v1058, 0
      %1170 = vmatpush.msra.mxu0 0.0
      %1171 = vmatpush.msra.mxu0 0.0
      %1172 = vmatpush.msra.mxu0 0.0
      %1173 = vmatpush.msra.mxu0 0.0
      %1174 = vmatpush.msra.mxu0 0.0
      %1175 = vmatpush.msra.mxu0 0.0
      %1176 = vmatpush.msra.mxu0 0.0
      %1177 = vmatpush.msra.mxu0 0.0
      %1178 = vmatpush.msra.mxu0 0.0
      %1179 = vmatpush.msra.mxu0 0.0
      %1180 = vmatpush.msra.mxu0 0.0
      %1181 = vmatpush.msra.mxu0 0.0
      %1182 = vmatpush.msra.mxu0 0.0
      %1183 = vmatpush.msra.mxu0 0.0
      %1184 = vmatpush.msra.mxu0 %v1061
      %1185 = vmatpush.msra.mxu0 %v1060
      %1186 = vmatmul.f32.gmra.mxu0 %v1063
      %v1187 = vpop.f32.mrf.mxu0
      %v1188 = vadd.f32 0.0, %v1187
      %1189 = vmatmul.f32.gmra.mxu0 %v1066
      %v1190 = vpop.f32.mrf.mxu0
      %v1191 = vadd.f32 0.0, %v1190
      %1192 = vmatmul.f32.gmra.mxu0 %v1069
      %v1193 = vpop.f32.mrf.mxu0
      %v1194 = vadd.f32 0.0, %v1193
      %1195 = vmatmul.f32.gmra.mxu0 %v1072
      %v1196 = vpop.f32.mrf.mxu0
      %v1197 = vadd.f32 0.0, %v1196
      %1198 = vmatmul.f32.gmra.mxu0 %v1075
      %v1199 = vpop.f32.mrf.mxu0
      %v1200 = vadd.f32 0.0, %v1199
      %1201 = vmatmul.f32.gmra.mxu0 %v1078
      %v1202 = vpop.f32.mrf.mxu0
      %v1203 = vadd.f32 0.0, %v1202
      %1204 = vmatmul.f32.gmra.mxu0 %v1081
      %v1205 = vpop.f32.mrf.mxu0
      %v1206 = vadd.f32 0.0, %v1205
      %1207 = vmatmul.f32.gmra.mxu0 %v1084
      %v1208 = vpop.f32.mrf.mxu0
      %v1209 = vadd.f32 0.0, %v1208
      %1210 = vmatmul.f32.gmra.mxu0 %v1087
      %v1211 = vpop.f32.mrf.mxu0
      %v1212 = vadd.f32 0.0, %v1211
      %1213 = vmatmul.f32.gmra.mxu0 %v1090
      %v1214 = vpop.f32.mrf.mxu0
      %v1215 = vadd.f32 0.0, %v1214
      %1216 = vmatmul.f32.gmra.mxu0 %v1093
      %v1217 = vpop.f32.mrf.mxu0
      %v1218 = vadd.f32 0.0, %v1217
      %1219 = vmatmul.f32.gmra.mxu0 %v1096
      %v1220 = vpop.f32.mrf.mxu0
      %v1221 = vadd.f32 0.0, %v1220
      %1222 = vmatmul.f32.gmra.mxu0 %v1099
      %v1223 = vpop.f32.mrf.mxu0
      %v1224 = vadd.f32 0.0, %v1223
      %1225 = vmatmul.f32.gmra.mxu0 %v1102
      %v1226 = vpop.f32.mrf.mxu0
      %v1227 = vadd.f32 0.0, %v1226
      %1228 = vmatmul.f32.gmra.mxu0 %v1105
      %v1229 = vpop.f32.mrf.mxu0
      %v1230 = vadd.f32 0.0, %v1229
      %1231 = vmatmul.f32.gmra.mxu0 %v1108
      %v1232 = vpop.f32.mrf.mxu0
      %v1233 = vadd.f32 0.0, %v1232
      %1234 = vmatmul.f32.gmra.mxu0 %v1111
      %v1235 = vpop.f32.mrf.mxu0
      %v1236 = vadd.f32 0.0, %v1235
      %1237 = vmatmul.f32.gmra.mxu0 %v1114
      %v1238 = vpop.f32.mrf.mxu0
      %v1239 = vadd.f32 0.0, %v1238
      %1240 = vmatmul.f32.gmra.mxu0 %v1117
      %v1241 = vpop.f32.mrf.mxu0
      %v1242 = vadd.f32 0.0, %v1241
      %1243 = vmatmul.f32.gmra.mxu0 %v1120
      %v1244 = vpop.f32.mrf.mxu0
      %v1245 = vadd.f32 0.0, %v1244
      %1246 = vmatmul.f32.gmra.mxu0 %v1123
      %v1247 = vpop.f32.mrf.mxu0
      %v1248 = vadd.f32 0.0, %v1247
      %1249 = vmatmul.f32.gmra.mxu0 %v1126
      %v1250 = vpop.f32.mrf.mxu0
      %v1251 = vadd.f32 0.0, %v1250
      %1252 = vmatmul.f32.gmra.mxu0 %v1129
      %v1253 = vpop.f32.mrf.mxu0
      %v1254 = vadd.f32 0.0, %v1253
      %1255 = vmatmul.f32.gmra.mxu0 %v1132
      %v1256 = vpop.f32.mrf.mxu0
      %v1257 = vadd.f32 0.0, %v1256
      %1258 = vmatmul.f32.gmra.mxu0 %v1135
      %v1259 = vpop.f32.mrf.mxu0
      %v1260 = vadd.f32 0.0, %v1259
      %1261 = vmatmul.f32.gmra.mxu0 %v1138
      %v1262 = vpop.f32.mrf.mxu0
      %v1263 = vadd.f32 0.0, %v1262
      %1264 = vmatmul.f32.gmra.mxu0 %v1141
      %v1265 = vpop.f32.mrf.mxu0
      %v1266 = vadd.f32 0.0, %v1265
      %1267 = vmatmul.f32.gmra.mxu0 %v1144
      %v1268 = vpop.f32.mrf.mxu0
      %v1269 = vadd.f32 0.0, %v1268
      %1270 = vmatmul.f32.gmra.mxu0 %v1147
      %v1271 = vpop.f32.mrf.mxu0
      %v1272 = vadd.f32 0.0, %v1271
      %1273 = vmatmul.f32.gmra.mxu0 %v1150
      %v1274 = vpop.f32.mrf.mxu0
      %v1275 = vadd.f32 0.0, %v1274
      %1276 = vmatmul.f32.gmra.mxu0 %v1153
      %v1277 = vpop.f32.mrf.mxu0
      %v1278 = vadd.f32 0.0, %v1277
      %1279 = vmatmul.f32.gmra.mxu0 %v1156
      %v1280 = vpop.f32.mrf.mxu0
      %v1281 = vadd.f32 0.0, %v1280
      %1282 = vmatmul.f32.gmra.mxu0 %v1159
      %v1283 = vpop.f32.mrf.mxu0
      %v1284 = vadd.f32 0.0, %v1283
      %1285 = vmatmul.f32.gmra.mxu0 %v1162
      %v1286 = vpop.f32.mrf.mxu0
      %v1287 = vadd.f32 0.0, %v1286
      %1288 = vmatmul.f32.gmra.mxu0 %v1165
      %v1289 = vpop.f32.mrf.mxu0
      %v1290 = vadd.f32 0.0, %v1289
      %1291 = vmatmul.f32.gmra.mxu0 %v1168
      %v1292 = vpop.f32.mrf.mxu0
      %v1293 = vadd.f32 0.0, %v1292
      %1294 = vdwg.mxu0
      %v1295 = vadd.f32 %v987, %v1188
      %v1296 = vadd.f32 %v988, %v1191
      %v1297 = vadd.f32 %v989, %v1194
      %v1298 = vadd.f32 %v990, %v1197
      %v1299 = vadd.f32 %v991, %v1200
      %v1300 = vadd.f32 %v992, %v1203
      %v1301 = vadd.f32 %v993, %v1206
      %v1302 = vadd.f32 %v994, %v1209
      %v1303 = vadd.f32 %v995, %v1212
      %v1304 = vadd.f32 %v996, %v1215
      %v1305 = vadd.f32 %v997, %v1218
      %v1306 = vadd.f32 %v998, %v1221
      %v1307 = vadd.f32 %v999, %v1224
      %v1308 = vadd.f32 %v1000, %v1227
      %v1309 = vadd.f32 %v1001, %v1230
      %v1310 = vadd.f32 %v1002, %v1233
      %v1311 = vadd.f32 %v1003, %v1236
      %v1312 = vadd.f32 %v1004, %v1239
      %v1313 = vadd.f32 %v1005, %v1242
      %v1314 = vadd.f32 %v1006, %v1245
      %v1315 = vadd.f32 %v1007, %v1248
      %v1316 = vadd.f32 %v1008, %v1251
      %v1317 = vadd.f32 %v1009, %v1254
      %v1318 = vadd.f32 %v1010, %v1257
      %v1319 = vadd.f32 %v1011, %v1260
      %v1320 = vadd.f32 %v1012, %v1263
      %v1321 = vadd.f32 %v1013, %v1266
      %v1322 = vadd.f32 %v1014, %v1269
      %v1323 = vadd.f32 %v1015, %v1272
      %v1324 = vadd.f32 %v1016, %v1275
      %v1325 = vadd.f32 %v1017, %v1278
      %v1326 = vadd.f32 %v1018, %v1281
      %v1327 = vadd.f32 %v1019, %v1284
      %v1328 = vadd.f32 %v1020, %v1287
      %v1329 = vadd.f32 %v1021, %v1290
      %v1330 = vadd.f32 %v1022, %v1293
      %v1331 = vld [vmem:[%s165 + $0x13] sm:$0xff]
      %v1332 = vld [vmem:[%s165 + $0x1b] sm:$0xff]
      %v1333 = vld [vmem:[%s165 + $0x23] sm:$0xff]
      %v1334 = vld [vmem:[%s165 + $0x2b] sm:$0xff]
      %v1335 = vld [vmem:[%s165 + $0x33] sm:$0xff]
      %v1336 = vld [vmem:[%s165 + $0x3b] sm:$0xff]
      %v1337 = vld [vmem:[%s165 + $0x43] sm:$0xff]
      %v1338 = vld [vmem:[%s165 + $0x4b] sm:$0xff]
      %v1339 = vld [vmem:[%s165 + $0x53] sm:$0xff]
      %v1340 = vld [vmem:[%s165 + $0x5b] sm:$0xff]
      %v1341 = vld [vmem:[%s165 + $0x63] sm:$0xff]
      %v1342 = vld [vmem:[%s165 + $0x6b] sm:$0xff]
      %v1343 = vld [vmem:[%s165 + $0x73] sm:$0xff]
      %v1344 = vld [vmem:[%s165 + $0x7b] sm:$0xff]
      %v1345 = vld [vmem:[%s165 + $0x83] sm:$0xff]
      %v1346 = vld [vmem:[%s165 + $0x8b] sm:$0xff]
      %v1347 = vld [vmem:[%s165 + $0x93] sm:$0xff]
      %v1348 = vld [vmem:[%s165 + $0x9b] sm:$0xff]
      %v1349 = vld [vmem:[%s165 + $0xa3] sm:$0xff]
      %v1350 = vld [vmem:[%s165 + $0xab] sm:$0xff]
      %v1351 = vld [vmem:[%s165 + $0xb3] sm:$0xff]
      %v1352 = vld [vmem:[%s165 + $0xbb] sm:$0xff]
      %v1353 = vld [vmem:[%s165 + $0xc3] sm:$0xff]
      %v1354 = vld [vmem:[%s165 + $0xcb] sm:$0xff]
      %v1355 = vld [vmem:[%s165 + $0xd3] sm:$0xff]
      %v1356 = vld [vmem:[%s165 + $0xdb] sm:$0xff]
      %v1357 = vld [vmem:[%s165 + $0xe3] sm:$0xff]
      %v1358 = vld [vmem:[%s165 + $0xeb] sm:$0xff]
      %v1359 = vld [vmem:[%s165 + $0xf3] sm:$0xff]
      %v1360 = vld [vmem:[%s165 + $0xfb] sm:$0xff]
      %v1361 = vld [vmem:[%s165 + $0x103] sm:$0xff]
      %v1362 = vld [vmem:[%s165 + $0x10b] sm:$0xff]
      %v1363 = vld [vmem:[%s165 + $0x113] sm:$0xff]
      %v1364 = vld [vmem:[%s165 + $0x11b] sm:$0xff]
      %v1365 = vld [vmem:[%s165 + $0x123] sm:$0xff]
      %v1366 = vld [vmem:[%s165 + $0x12b] sm:$0xff]
      %s1367 = scalar_lea.vmem %s1, 64
      %v1368 = vld [vmem:[%s1367] sm:$0xff]
      %v1369 = vld [vmem:[%s1367 + $0x8] sm:$0xff]
      %v1371 = vsel %vm248, %v1331, 0
      %v1374 = vsel %vm248, %v1332, 0
      %v1377 = vsel %vm248, %v1333, 0
      %v1380 = vsel %vm248, %v1334, 0
      %v1383 = vsel %vm248, %v1335, 0
      %v1386 = vsel %vm248, %v1336, 0
      %v1389 = vsel %vm248, %v1337, 0
      %v1392 = vsel %vm248, %v1338, 0
      %v1395 = vsel %vm248, %v1339, 0
      %v1398 = vsel %vm248, %v1340, 0
      %v1401 = vsel %vm248, %v1341, 0
      %v1404 = vsel %vm248, %v1342, 0
      %v1407 = vsel %vm248, %v1343, 0
      %v1410 = vsel %vm248, %v1344, 0
      %v1413 = vsel %vm248, %v1345, 0
      %v1416 = vsel %vm248, %v1346, 0
      %v1419 = vsel %vm248, %v1347, 0
      %v1422 = vsel %vm248, %v1348, 0
      %v1425 = vsel %vm248, %v1349, 0
      %v1428 = vsel %vm248, %v1350, 0
      %v1431 = vsel %vm248, %v1351, 0
      %v1434 = vsel %vm248, %v1352, 0
      %v1437 = vsel %vm248, %v1353, 0
      %v1440 = vsel %vm248, %v1354, 0
      %v1443 = vsel %vm248, %v1355, 0
      %v1446 = vsel %vm248, %v1356, 0
      %v1449 = vsel %vm248, %v1357, 0
      %v1452 = vsel %vm248, %v1358, 0
      %v1455 = vsel %vm248, %v1359, 0
      %v1458 = vsel %vm248, %v1360, 0
      %v1461 = vsel %vm248, %v1361, 0
      %v1464 = vsel %vm248, %v1362, 0
      %v1467 = vsel %vm248, %v1363, 0
      %v1470 = vsel %vm248, %v1364, 0
      %v1473 = vsel %vm248, %v1365, 0
      %v1476 = vsel %vm248, %v1366, 0
      %1478 = vmatpush.msra.mxu0 0.0
      %1479 = vmatpush.msra.mxu0 0.0
      %1480 = vmatpush.msra.mxu0 0.0
      %1481 = vmatpush.msra.mxu0 0.0
      %1482 = vmatpush.msra.mxu0 0.0
      %1483 = vmatpush.msra.mxu0 0.0
      %1484 = vmatpush.msra.mxu0 0.0
      %1485 = vmatpush.msra.mxu0 0.0
      %1486 = vmatpush.msra.mxu0 0.0
      %1487 = vmatpush.msra.mxu0 0.0
      %1488 = vmatpush.msra.mxu0 0.0
      %1489 = vmatpush.msra.mxu0 0.0
      %1490 = vmatpush.msra.mxu0 0.0
      %1491 = vmatpush.msra.mxu0 0.0
      %1492 = vmatpush.msra.mxu0 %v1369
      %1493 = vmatpush.msra.mxu0 %v1368
      %1494 = vmatmul.f32.gmra.mxu0 %v1371
      %v1495 = vpop.f32.mrf.mxu0
      %v1496 = vadd.f32 0.0, %v1495
      %1497 = vmatmul.f32.gmra.mxu0 %v1374
      %v1498 = vpop.f32.mrf.mxu0
      %v1499 = vadd.f32 0.0, %v1498
      %1500 = vmatmul.f32.gmra.mxu0 %v1377
      %v1501 = vpop.f32.mrf.mxu0
      %v1502 = vadd.f32 0.0, %v1501
      %1503 = vmatmul.f32.gmra.mxu0 %v1380
      %v1504 = vpop.f32.mrf.mxu0
      %v1505 = vadd.f32 0.0, %v1504
      %1506 = vmatmul.f32.gmra.mxu0 %v1383
      %v1507 = vpop.f32.mrf.mxu0
      %v1508 = vadd.f32 0.0, %v1507
      %1509 = vmatmul.f32.gmra.mxu0 %v1386
      %v1510 = vpop.f32.mrf.mxu0
      %v1511 = vadd.f32 0.0, %v1510
      %1512 = vmatmul.f32.gmra.mxu0 %v1389
      %v1513 = vpop.f32.mrf.mxu0
      %v1514 = vadd.f32 0.0, %v1513
      %1515 = vmatmul.f32.gmra.mxu0 %v1392
      %v1516 = vpop.f32.mrf.mxu0
      %v1517 = vadd.f32 0.0, %v1516
      %1518 = vmatmul.f32.gmra.mxu0 %v1395
      %v1519 = vpop.f32.mrf.mxu0
      %v1520 = vadd.f32 0.0, %v1519
      %1521 = vmatmul.f32.gmra.mxu0 %v1398
      %v1522 = vpop.f32.mrf.mxu0
      %v1523 = vadd.f32 0.0, %v1522
      %1524 = vmatmul.f32.gmra.mxu0 %v1401
      %v1525 = vpop.f32.mrf.mxu0
      %v1526 = vadd.f32 0.0, %v1525
      %1527 = vmatmul.f32.gmra.mxu0 %v1404
      %v1528 = vpop.f32.mrf.mxu0
      %v1529 = vadd.f32 0.0, %v1528
      %1530 = vmatmul.f32.gmra.mxu0 %v1407
      %v1531 = vpop.f32.mrf.mxu0
      %v1532 = vadd.f32 0.0, %v1531
      %1533 = vmatmul.f32.gmra.mxu0 %v1410
      %v1534 = vpop.f32.mrf.mxu0
      %v1535 = vadd.f32 0.0, %v1534
      %1536 = vmatmul.f32.gmra.mxu0 %v1413
      %v1537 = vpop.f32.mrf.mxu0
      %v1538 = vadd.f32 0.0, %v1537
      %1539 = vmatmul.f32.gmra.mxu0 %v1416
      %v1540 = vpop.f32.mrf.mxu0
      %v1541 = vadd.f32 0.0, %v1540
      %1542 = vmatmul.f32.gmra.mxu0 %v1419
      %v1543 = vpop.f32.mrf.mxu0
      %v1544 = vadd.f32 0.0, %v1543
      %1545 = vmatmul.f32.gmra.mxu0 %v1422
      %v1546 = vpop.f32.mrf.mxu0
      %v1547 = vadd.f32 0.0, %v1546
      %1548 = vmatmul.f32.gmra.mxu0 %v1425
      %v1549 = vpop.f32.mrf.mxu0
      %v1550 = vadd.f32 0.0, %v1549
      %1551 = vmatmul.f32.gmra.mxu0 %v1428
      %v1552 = vpop.f32.mrf.mxu0
      %v1553 = vadd.f32 0.0, %v1552
      %1554 = vmatmul.f32.gmra.mxu0 %v1431
      %v1555 = vpop.f32.mrf.mxu0
      %v1556 = vadd.f32 0.0, %v1555
      %1557 = vmatmul.f32.gmra.mxu0 %v1434
      %v1558 = vpop.f32.mrf.mxu0
      %v1559 = vadd.f32 0.0, %v1558
      %1560 = vmatmul.f32.gmra.mxu0 %v1437
      %v1561 = vpop.f32.mrf.mxu0
      %v1562 = vadd.f32 0.0, %v1561
      %1563 = vmatmul.f32.gmra.mxu0 %v1440
      %v1564 = vpop.f32.mrf.mxu0
      %v1565 = vadd.f32 0.0, %v1564
      %1566 = vmatmul.f32.gmra.mxu0 %v1443
      %v1567 = vpop.f32.mrf.mxu0
      %v1568 = vadd.f32 0.0, %v1567
      %1569 = vmatmul.f32.gmra.mxu0 %v1446
      %v1570 = vpop.f32.mrf.mxu0
      %v1571 = vadd.f32 0.0, %v1570
      %1572 = vmatmul.f32.gmra.mxu0 %v1449
      %v1573 = vpop.f32.mrf.mxu0
      %v1574 = vadd.f32 0.0, %v1573
      %1575 = vmatmul.f32.gmra.mxu0 %v1452
      %v1576 = vpop.f32.mrf.mxu0
      %v1577 = vadd.f32 0.0, %v1576
      %1578 = vmatmul.f32.gmra.mxu0 %v1455
      %v1579 = vpop.f32.mrf.mxu0
      %v1580 = vadd.f32 0.0, %v1579
      %1581 = vmatmul.f32.gmra.mxu0 %v1458
      %v1582 = vpop.f32.mrf.mxu0
      %v1583 = vadd.f32 0.0, %v1582
      %1584 = vmatmul.f32.gmra.mxu0 %v1461
      %v1585 = vpop.f32.mrf.mxu0
      %v1586 = vadd.f32 0.0, %v1585
      %1587 = vmatmul.f32.gmra.mxu0 %v1464
      %v1588 = vpop.f32.mrf.mxu0
      %v1589 = vadd.f32 0.0, %v1588
      %1590 = vmatmul.f32.gmra.mxu0 %v1467
      %v1591 = vpop.f32.mrf.mxu0
      %v1592 = vadd.f32 0.0, %v1591
      %1593 = vmatmul.f32.gmra.mxu0 %v1470
      %v1594 = vpop.f32.mrf.mxu0
      %v1595 = vadd.f32 0.0, %v1594
      %1596 = vmatmul.f32.gmra.mxu0 %v1473
      %v1597 = vpop.f32.mrf.mxu0
      %v1598 = vadd.f32 0.0, %v1597
      %1599 = vmatmul.f32.gmra.mxu0 %v1476
      %v1600 = vpop.f32.mrf.mxu0
      %v1601 = vadd.f32 0.0, %v1600
      %1602 = vdwg.mxu0
      %v1603 = vadd.f32 %v1295, %v1496
      %v1604 = vadd.f32 %v1296, %v1499
      %v1605 = vadd.f32 %v1297, %v1502
      %v1606 = vadd.f32 %v1298, %v1505
      %v1607 = vadd.f32 %v1299, %v1508
      %v1608 = vadd.f32 %v1300, %v1511
      %v1609 = vadd.f32 %v1301, %v1514
      %v1610 = vadd.f32 %v1302, %v1517
      %v1611 = vadd.f32 %v1303, %v1520
      %v1612 = vadd.f32 %v1304, %v1523
      %v1613 = vadd.f32 %v1305, %v1526
      %v1614 = vadd.f32 %v1306, %v1529
      %v1615 = vadd.f32 %v1307, %v1532
      %v1616 = vadd.f32 %v1308, %v1535
      %v1617 = vadd.f32 %v1309, %v1538
      %v1618 = vadd.f32 %v1310, %v1541
      %v1619 = vadd.f32 %v1311, %v1544
      %v1620 = vadd.f32 %v1312, %v1547
      %v1621 = vadd.f32 %v1313, %v1550
      %v1622 = vadd.f32 %v1314, %v1553
      %v1623 = vadd.f32 %v1315, %v1556
      %v1624 = vadd.f32 %v1316, %v1559
      %v1625 = vadd.f32 %v1317, %v1562
      %v1626 = vadd.f32 %v1318, %v1565
      %v1627 = vadd.f32 %v1319, %v1568
      %v1628 = vadd.f32 %v1320, %v1571
      %v1629 = vadd.f32 %v1321, %v1574
      %v1630 = vadd.f32 %v1322, %v1577
      %v1631 = vadd.f32 %v1323, %v1580
      %v1632 = vadd.f32 %v1324, %v1583
      %v1633 = vadd.f32 %v1325, %v1586
      %v1634 = vadd.f32 %v1326, %v1589
      %v1635 = vadd.f32 %v1327, %v1592
      %v1636 = vadd.f32 %v1328, %v1595
      %v1637 = vadd.f32 %v1329, %v1598
      %v1638 = vadd.f32 %v1330, %v1601
      %v1639 = vld [vmem:[%s165 + $0x14] sm:$0xff]
      %v1640 = vld [vmem:[%s165 + $0x1c] sm:$0xff]
      %v1641 = vld [vmem:[%s165 + $0x24] sm:$0xff]
      %v1642 = vld [vmem:[%s165 + $0x2c] sm:$0xff]
      %v1643 = vld [vmem:[%s165 + $0x34] sm:$0xff]
      %v1644 = vld [vmem:[%s165 + $0x3c] sm:$0xff]
      %v1645 = vld [vmem:[%s165 + $0x44] sm:$0xff]
      %v1646 = vld [vmem:[%s165 + $0x4c] sm:$0xff]
      %v1647 = vld [vmem:[%s165 + $0x54] sm:$0xff]
      %v1648 = vld [vmem:[%s165 + $0x5c] sm:$0xff]
      %v1649 = vld [vmem:[%s165 + $0x64] sm:$0xff]
      %v1650 = vld [vmem:[%s165 + $0x6c] sm:$0xff]
      %v1651 = vld [vmem:[%s165 + $0x74] sm:$0xff]
      %v1652 = vld [vmem:[%s165 + $0x7c] sm:$0xff]
      %v1653 = vld [vmem:[%s165 + $0x84] sm:$0xff]
      %v1654 = vld [vmem:[%s165 + $0x8c] sm:$0xff]
      %v1655 = vld [vmem:[%s165 + $0x94] sm:$0xff]
      %v1656 = vld [vmem:[%s165 + $0x9c] sm:$0xff]
      %v1657 = vld [vmem:[%s165 + $0xa4] sm:$0xff]
      %v1658 = vld [vmem:[%s165 + $0xac] sm:$0xff]
      %v1659 = vld [vmem:[%s165 + $0xb4] sm:$0xff]
      %v1660 = vld [vmem:[%s165 + $0xbc] sm:$0xff]
      %v1661 = vld [vmem:[%s165 + $0xc4] sm:$0xff]
      %v1662 = vld [vmem:[%s165 + $0xcc] sm:$0xff]
      %v1663 = vld [vmem:[%s165 + $0xd4] sm:$0xff]
      %v1664 = vld [vmem:[%s165 + $0xdc] sm:$0xff]
      %v1665 = vld [vmem:[%s165 + $0xe4] sm:$0xff]
      %v1666 = vld [vmem:[%s165 + $0xec] sm:$0xff]
      %v1667 = vld [vmem:[%s165 + $0xf4] sm:$0xff]
      %v1668 = vld [vmem:[%s165 + $0xfc] sm:$0xff]
      %v1669 = vld [vmem:[%s165 + $0x104] sm:$0xff]
      %v1670 = vld [vmem:[%s165 + $0x10c] sm:$0xff]
      %v1671 = vld [vmem:[%s165 + $0x114] sm:$0xff]
      %v1672 = vld [vmem:[%s165 + $0x11c] sm:$0xff]
      %v1673 = vld [vmem:[%s165 + $0x124] sm:$0xff]
      %v1674 = vld [vmem:[%s165 + $0x12c] sm:$0xff]
      %s1675 = scalar_lea.vmem %s1, 80
      %v1676 = vld [vmem:[%s1675] sm:$0xff]
      %v1677 = vld [vmem:[%s1675 + $0x8] sm:$0xff]
      %v1679 = vsel %vm248, %v1639, 0
      %v1682 = vsel %vm248, %v1640, 0
      %v1685 = vsel %vm248, %v1641, 0
      %v1688 = vsel %vm248, %v1642, 0
      %v1691 = vsel %vm248, %v1643, 0
      %v1694 = vsel %vm248, %v1644, 0
      %v1697 = vsel %vm248, %v1645, 0
      %v1700 = vsel %vm248, %v1646, 0
      %v1703 = vsel %vm248, %v1647, 0
      %v1706 = vsel %vm248, %v1648, 0
      %v1709 = vsel %vm248, %v1649, 0
      %v1712 = vsel %vm248, %v1650, 0
      %v1715 = vsel %vm248, %v1651, 0
      %v1718 = vsel %vm248, %v1652, 0
      %v1721 = vsel %vm248, %v1653, 0
      %v1724 = vsel %vm248, %v1654, 0
      %v1727 = vsel %vm248, %v1655, 0
      %v1730 = vsel %vm248, %v1656, 0
      %v1733 = vsel %vm248, %v1657, 0
      %v1736 = vsel %vm248, %v1658, 0
      %v1739 = vsel %vm248, %v1659, 0
      %v1742 = vsel %vm248, %v1660, 0
      %v1745 = vsel %vm248, %v1661, 0
      %v1748 = vsel %vm248, %v1662, 0
      %v1751 = vsel %vm248, %v1663, 0
      %v1754 = vsel %vm248, %v1664, 0
      %v1757 = vsel %vm248, %v1665, 0
      %v1760 = vsel %vm248, %v1666, 0
      %v1763 = vsel %vm248, %v1667, 0
      %v1766 = vsel %vm248, %v1668, 0
      %v1769 = vsel %vm248, %v1669, 0
      %v1772 = vsel %vm248, %v1670, 0
      %v1775 = vsel %vm248, %v1671, 0
      %v1778 = vsel %vm248, %v1672, 0
      %v1781 = vsel %vm248, %v1673, 0
      %v1784 = vsel %vm248, %v1674, 0
      %1786 = vmatpush.msra.mxu0 0.0
      %1787 = vmatpush.msra.mxu0 0.0
      %1788 = vmatpush.msra.mxu0 0.0
      %1789 = vmatpush.msra.mxu0 0.0
      %1790 = vmatpush.msra.mxu0 0.0
      %1791 = vmatpush.msra.mxu0 0.0
      %1792 = vmatpush.msra.mxu0 0.0
      %1793 = vmatpush.msra.mxu0 0.0
      %1794 = vmatpush.msra.mxu0 0.0
      %1795 = vmatpush.msra.mxu0 0.0
      %1796 = vmatpush.msra.mxu0 0.0
      %1797 = vmatpush.msra.mxu0 0.0
      %1798 = vmatpush.msra.mxu0 0.0
      %1799 = vmatpush.msra.mxu0 0.0
      %1800 = vmatpush.msra.mxu0 %v1677
      %1801 = vmatpush.msra.mxu0 %v1676
      %1802 = vmatmul.f32.gmra.mxu0 %v1679
      %v1803 = vpop.f32.mrf.mxu0
      %v1804 = vadd.f32 0.0, %v1803
      %1805 = vmatmul.f32.gmra.mxu0 %v1682
      %v1806 = vpop.f32.mrf.mxu0
      %v1807 = vadd.f32 0.0, %v1806
      %1808 = vmatmul.f32.gmra.mxu0 %v1685
      %v1809 = vpop.f32.mrf.mxu0
      %v1810 = vadd.f32 0.0, %v1809
      %1811 = vmatmul.f32.gmra.mxu0 %v1688
      %v1812 = vpop.f32.mrf.mxu0
      %v1813 = vadd.f32 0.0, %v1812
      %1814 = vmatmul.f32.gmra.mxu0 %v1691
      %v1815 = vpop.f32.mrf.mxu0
      %v1816 = vadd.f32 0.0, %v1815
      %1817 = vmatmul.f32.gmra.mxu0 %v1694
      %v1818 = vpop.f32.mrf.mxu0
      %v1819 = vadd.f32 0.0, %v1818
      %1820 = vmatmul.f32.gmra.mxu0 %v1697
      %v1821 = vpop.f32.mrf.mxu0
      %v1822 = vadd.f32 0.0, %v1821
      %1823 = vmatmul.f32.gmra.mxu0 %v1700
      %v1824 = vpop.f32.mrf.mxu0
      %v1825 = vadd.f32 0.0, %v1824
      %1826 = vmatmul.f32.gmra.mxu0 %v1703
      %v1827 = vpop.f32.mrf.mxu0
      %v1828 = vadd.f32 0.0, %v1827
      %1829 = vmatmul.f32.gmra.mxu0 %v1706
      %v1830 = vpop.f32.mrf.mxu0
      %v1831 = vadd.f32 0.0, %v1830
      %1832 = vmatmul.f32.gmra.mxu0 %v1709
      %v1833 = vpop.f32.mrf.mxu0
      %v1834 = vadd.f32 0.0, %v1833
      %1835 = vmatmul.f32.gmra.mxu0 %v1712
      %v1836 = vpop.f32.mrf.mxu0
      %v1837 = vadd.f32 0.0, %v1836
      %1838 = vmatmul.f32.gmra.mxu0 %v1715
      %v1839 = vpop.f32.mrf.mxu0
      %v1840 = vadd.f32 0.0, %v1839
      %1841 = vmatmul.f32.gmra.mxu0 %v1718
      %v1842 = vpop.f32.mrf.mxu0
      %v1843 = vadd.f32 0.0, %v1842
      %1844 = vmatmul.f32.gmra.mxu0 %v1721
      %v1845 = vpop.f32.mrf.mxu0
      %v1846 = vadd.f32 0.0, %v1845
      %1847 = vmatmul.f32.gmra.mxu0 %v1724
      %v1848 = vpop.f32.mrf.mxu0
      %v1849 = vadd.f32 0.0, %v1848
      %1850 = vmatmul.f32.gmra.mxu0 %v1727
      %v1851 = vpop.f32.mrf.mxu0
      %v1852 = vadd.f32 0.0, %v1851
      %1853 = vmatmul.f32.gmra.mxu0 %v1730
      %v1854 = vpop.f32.mrf.mxu0
      %v1855 = vadd.f32 0.0, %v1854
      %1856 = vmatmul.f32.gmra.mxu0 %v1733
      %v1857 = vpop.f32.mrf.mxu0
      %v1858 = vadd.f32 0.0, %v1857
      %1859 = vmatmul.f32.gmra.mxu0 %v1736
      %v1860 = vpop.f32.mrf.mxu0
      %v1861 = vadd.f32 0.0, %v1860
      %1862 = vmatmul.f32.gmra.mxu0 %v1739
      %v1863 = vpop.f32.mrf.mxu0
      %v1864 = vadd.f32 0.0, %v1863
      %1865 = vmatmul.f32.gmra.mxu0 %v1742
      %v1866 = vpop.f32.mrf.mxu0
      %v1867 = vadd.f32 0.0, %v1866
      %1868 = vmatmul.f32.gmra.mxu0 %v1745
      %v1869 = vpop.f32.mrf.mxu0
      %v1870 = vadd.f32 0.0, %v1869
      %1871 = vmatmul.f32.gmra.mxu0 %v1748
      %v1872 = vpop.f32.mrf.mxu0
      %v1873 = vadd.f32 0.0, %v1872
      %1874 = vmatmul.f32.gmra.mxu0 %v1751
      %v1875 = vpop.f32.mrf.mxu0
      %v1876 = vadd.f32 0.0, %v1875
      %1877 = vmatmul.f32.gmra.mxu0 %v1754
      %v1878 = vpop.f32.mrf.mxu0
      %v1879 = vadd.f32 0.0, %v1878
      %1880 = vmatmul.f32.gmra.mxu0 %v1757
      %v1881 = vpop.f32.mrf.mxu0
      %v1882 = vadd.f32 0.0, %v1881
      %1883 = vmatmul.f32.gmra.mxu0 %v1760
      %v1884 = vpop.f32.mrf.mxu0
      %v1885 = vadd.f32 0.0, %v1884
      %1886 = vmatmul.f32.gmra.mxu0 %v1763
      %v1887 = vpop.f32.mrf.mxu0
      %v1888 = vadd.f32 0.0, %v1887
      %1889 = vmatmul.f32.gmra.mxu0 %v1766
      %v1890 = vpop.f32.mrf.mxu0
      %v1891 = vadd.f32 0.0, %v1890
      %1892 = vmatmul.f32.gmra.mxu0 %v1769
      %v1893 = vpop.f32.mrf.mxu0
      %v1894 = vadd.f32 0.0, %v1893
      %1895 = vmatmul.f32.gmra.mxu0 %v1772
      %v1896 = vpop.f32.mrf.mxu0
      %v1897 = vadd.f32 0.0, %v1896
      %1898 = vmatmul.f32.gmra.mxu0 %v1775
      %v1899 = vpop.f32.mrf.mxu0
      %v1900 = vadd.f32 0.0, %v1899
      %1901 = vmatmul.f32.gmra.mxu0 %v1778
      %v1902 = vpop.f32.mrf.mxu0
      %v1903 = vadd.f32 0.0, %v1902
      %1904 = vmatmul.f32.gmra.mxu0 %v1781
      %v1905 = vpop.f32.mrf.mxu0
      %v1906 = vadd.f32 0.0, %v1905
      %1907 = vmatmul.f32.gmra.mxu0 %v1784
      %v1908 = vpop.f32.mrf.mxu0
      %v1909 = vadd.f32 0.0, %v1908
      %1910 = vdwg.mxu0
      %v1911 = vadd.f32 %v1603, %v1804
      %v1912 = vadd.f32 %v1604, %v1807
      %v1913 = vadd.f32 %v1605, %v1810
      %v1914 = vadd.f32 %v1606, %v1813
      %v1915 = vadd.f32 %v1607, %v1816
      %v1916 = vadd.f32 %v1608, %v1819
      %v1917 = vadd.f32 %v1609, %v1822
      %v1918 = vadd.f32 %v1610, %v1825
      %v1919 = vadd.f32 %v1611, %v1828
      %v1920 = vadd.f32 %v1612, %v1831
      %v1921 = vadd.f32 %v1613, %v1834
      %v1922 = vadd.f32 %v1614, %v1837
      %v1923 = vadd.f32 %v1615, %v1840
      %v1924 = vadd.f32 %v1616, %v1843
      %v1925 = vadd.f32 %v1617, %v1846
      %v1926 = vadd.f32 %v1618, %v1849
      %v1927 = vadd.f32 %v1619, %v1852
      %v1928 = vadd.f32 %v1620, %v1855
      %v1929 = vadd.f32 %v1621, %v1858
      %v1930 = vadd.f32 %v1622, %v1861
      %v1931 = vadd.f32 %v1623, %v1864
      %v1932 = vadd.f32 %v1624, %v1867
      %v1933 = vadd.f32 %v1625, %v1870
      %v1934 = vadd.f32 %v1626, %v1873
      %v1935 = vadd.f32 %v1627, %v1876
      %v1936 = vadd.f32 %v1628, %v1879
      %v1937 = vadd.f32 %v1629, %v1882
      %v1938 = vadd.f32 %v1630, %v1885
      %v1939 = vadd.f32 %v1631, %v1888
      %v1940 = vadd.f32 %v1632, %v1891
      %v1941 = vadd.f32 %v1633, %v1894
      %v1942 = vadd.f32 %v1634, %v1897
      %v1943 = vadd.f32 %v1635, %v1900
      %v1944 = vadd.f32 %v1636, %v1903
      %v1945 = vadd.f32 %v1637, %v1906
      %v1946 = vadd.f32 %v1638, %v1909
      %v1947 = vld [vmem:[%s165 + $0x24] sm:$0xff]
      %v1948 = vld [vmem:[%s165 + $0x2c] sm:$0xff]
      %v1949 = vld [vmem:[%s165 + $0x34] sm:$0xff]
      %v1950 = vld [vmem:[%s165 + $0x3c] sm:$0xff]
      %v1951 = vld [vmem:[%s165 + $0x44] sm:$0xff]
      %v1952 = vld [vmem:[%s165 + $0x4c] sm:$0xff]
      %v1953 = vld [vmem:[%s165 + $0x54] sm:$0xff]
      %v1954 = vld [vmem:[%s165 + $0x5c] sm:$0xff]
      %v1955 = vld [vmem:[%s165 + $0x64] sm:$0xff]
      %v1956 = vld [vmem:[%s165 + $0x6c] sm:$0xff]
      %v1957 = vld [vmem:[%s165 + $0x74] sm:$0xff]
      %v1958 = vld [vmem:[%s165 + $0x7c] sm:$0xff]
      %v1959 = vld [vmem:[%s165 + $0x84] sm:$0xff]
      %v1960 = vld [vmem:[%s165 + $0x8c] sm:$0xff]
      %v1961 = vld [vmem:[%s165 + $0x94] sm:$0xff]
      %v1962 = vld [vmem:[%s165 + $0x9c] sm:$0xff]
      %v1963 = vld [vmem:[%s165 + $0xa4] sm:$0xff]
      %v1964 = vld [vmem:[%s165 + $0xac] sm:$0xff]
      %v1965 = vld [vmem:[%s165 + $0xb4] sm:$0xff]
      %v1966 = vld [vmem:[%s165 + $0xbc] sm:$0xff]
      %v1967 = vld [vmem:[%s165 + $0xc4] sm:$0xff]
      %v1968 = vld [vmem:[%s165 + $0xcc] sm:$0xff]
      %v1969 = vld [vmem:[%s165 + $0xd4] sm:$0xff]
      %v1970 = vld [vmem:[%s165 + $0xdc] sm:$0xff]
      %v1971 = vld [vmem:[%s165 + $0xe4] sm:$0xff]
      %v1972 = vld [vmem:[%s165 + $0xec] sm:$0xff]
      %v1973 = vld [vmem:[%s165 + $0xf4] sm:$0xff]
      %v1974 = vld [vmem:[%s165 + $0xfc] sm:$0xff]
      %v1975 = vld [vmem:[%s165 + $0x104] sm:$0xff]
      %v1976 = vld [vmem:[%s165 + $0x10c] sm:$0xff]
      %v1977 = vld [vmem:[%s165 + $0x114] sm:$0xff]
      %v1978 = vld [vmem:[%s165 + $0x11c] sm:$0xff]
      %v1979 = vld [vmem:[%s165 + $0x124] sm:$0xff]
      %v1980 = vld [vmem:[%s165 + $0x12c] sm:$0xff]
      %v1981 = vld [vmem:[%s165 + $0x134] sm:$0xff]
      %v1982 = vld [vmem:[%s165 + $0x13c] sm:$0xff]
      %s1983 = scalar_lea.vmem %s1, 96
      %v1984 = vld [vmem:[%s1983] sm:$0xff]
      %v1985 = vld [vmem:[%s1983 + $0x8] sm:$0xff]
      %v1987 = vsel %vm248, %v1947, 0
      %v1990 = vsel %vm248, %v1948, 0
      %v1993 = vsel %vm248, %v1949, 0
      %v1996 = vsel %vm248, %v1950, 0
      %v1999 = vsel %vm248, %v1951, 0
      %v2002 = vsel %vm248, %v1952, 0
      %v2005 = vsel %vm248, %v1953, 0
      %v2008 = vsel %vm248, %v1954, 0
      %v2011 = vsel %vm248, %v1955, 0
      %v2014 = vsel %vm248, %v1956, 0
      %v2017 = vsel %vm248, %v1957, 0
      %v2020 = vsel %vm248, %v1958, 0
      %v2023 = vsel %vm248, %v1959, 0
      %v2026 = vsel %vm248, %v1960, 0
      %v2029 = vsel %vm248, %v1961, 0
      %v2032 = vsel %vm248, %v1962, 0
      %v2035 = vsel %vm248, %v1963, 0
      %v2038 = vsel %vm248, %v1964, 0
      %v2041 = vsel %vm248, %v1965, 0
      %v2044 = vsel %vm248, %v1966, 0
      %v2047 = vsel %vm248, %v1967, 0
      %v2050 = vsel %vm248, %v1968, 0
      %v2053 = vsel %vm248, %v1969, 0
      %v2056 = vsel %vm248, %v1970, 0
      %v2059 = vsel %vm248, %v1971, 0
      %v2062 = vsel %vm248, %v1972, 0
      %v2065 = vsel %vm248, %v1973, 0
      %v2068 = vsel %vm248, %v1974, 0
      %v2071 = vsel %vm248, %v1975, 0
      %v2074 = vsel %vm248, %v1976, 0
      %v2077 = vsel %vm248, %v1977, 0
      %v2080 = vsel %vm248, %v1978, 0
      %v2083 = vsel %vm248, %v1979, 0
      %v2086 = vsel %vm248, %v1980, 0
      %v2089 = vsel %vm248, %v1981, 0
      %v2092 = vsel %vm248, %v1982, 0
      %2094 = vmatpush.msra.mxu0 0.0
      %2095 = vmatpush.msra.mxu0 0.0
      %2096 = vmatpush.msra.mxu0 0.0
      %2097 = vmatpush.msra.mxu0 0.0
      %2098 = vmatpush.msra.mxu0 0.0
      %2099 = vmatpush.msra.mxu0 0.0
      %2100 = vmatpush.msra.mxu0 0.0
      %2101 = vmatpush.msra.mxu0 0.0
      %2102 = vmatpush.msra.mxu0 0.0
      %2103 = vmatpush.msra.mxu0 0.0
      %2104 = vmatpush.msra.mxu0 0.0
      %2105 = vmatpush.msra.mxu0 0.0
      %2106 = vmatpush.msra.mxu0 0.0
      %2107 = vmatpush.msra.mxu0 0.0
      %2108 = vmatpush.msra.mxu0 %v1985
      %2109 = vmatpush.msra.mxu0 %v1984
      %2110 = vmatmul.f32.gmra.mxu0 %v1987
      %v2111 = vpop.f32.mrf.mxu0
      %v2112 = vadd.f32 0.0, %v2111
      %2113 = vmatmul.f32.gmra.mxu0 %v1990
      %v2114 = vpop.f32.mrf.mxu0
      %v2115 = vadd.f32 0.0, %v2114
      %2116 = vmatmul.f32.gmra.mxu0 %v1993
      %v2117 = vpop.f32.mrf.mxu0
      %v2118 = vadd.f32 0.0, %v2117
      %2119 = vmatmul.f32.gmra.mxu0 %v1996
      %v2120 = vpop.f32.mrf.mxu0
      %v2121 = vadd.f32 0.0, %v2120
      %2122 = vmatmul.f32.gmra.mxu0 %v1999
      %v2123 = vpop.f32.mrf.mxu0
      %v2124 = vadd.f32 0.0, %v2123
      %2125 = vmatmul.f32.gmra.mxu0 %v2002
      %v2126 = vpop.f32.mrf.mxu0
      %v2127 = vadd.f32 0.0, %v2126
      %2128 = vmatmul.f32.gmra.mxu0 %v2005
      %v2129 = vpop.f32.mrf.mxu0
      %v2130 = vadd.f32 0.0, %v2129
      %2131 = vmatmul.f32.gmra.mxu0 %v2008
      %v2132 = vpop.f32.mrf.mxu0
      %v2133 = vadd.f32 0.0, %v2132
      %2134 = vmatmul.f32.gmra.mxu0 %v2011
      %v2135 = vpop.f32.mrf.mxu0
      %v2136 = vadd.f32 0.0, %v2135
      %2137 = vmatmul.f32.gmra.mxu0 %v2014
      %v2138 = vpop.f32.mrf.mxu0
      %v2139 = vadd.f32 0.0, %v2138
      %2140 = vmatmul.f32.gmra.mxu0 %v2017
      %v2141 = vpop.f32.mrf.mxu0
      %v2142 = vadd.f32 0.0, %v2141
      %2143 = vmatmul.f32.gmra.mxu0 %v2020
      %v2144 = vpop.f32.mrf.mxu0
      %v2145 = vadd.f32 0.0, %v2144
      %2146 = vmatmul.f32.gmra.mxu0 %v2023
      %v2147 = vpop.f32.mrf.mxu0
      %v2148 = vadd.f32 0.0, %v2147
      %2149 = vmatmul.f32.gmra.mxu0 %v2026
      %v2150 = vpop.f32.mrf.mxu0
      %v2151 = vadd.f32 0.0, %v2150
      %2152 = vmatmul.f32.gmra.mxu0 %v2029
      %v2153 = vpop.f32.mrf.mxu0
      %v2154 = vadd.f32 0.0, %v2153
      %2155 = vmatmul.f32.gmra.mxu0 %v2032
      %v2156 = vpop.f32.mrf.mxu0
      %v2157 = vadd.f32 0.0, %v2156
      %2158 = vmatmul.f32.gmra.mxu0 %v2035
      %v2159 = vpop.f32.mrf.mxu0
      %v2160 = vadd.f32 0.0, %v2159
      %2161 = vmatmul.f32.gmra.mxu0 %v2038
      %v2162 = vpop.f32.mrf.mxu0
      %v2163 = vadd.f32 0.0, %v2162
      %2164 = vmatmul.f32.gmra.mxu0 %v2041
      %v2165 = vpop.f32.mrf.mxu0
      %v2166 = vadd.f32 0.0, %v2165
      %2167 = vmatmul.f32.gmra.mxu0 %v2044
      %v2168 = vpop.f32.mrf.mxu0
      %v2169 = vadd.f32 0.0, %v2168
      %2170 = vmatmul.f32.gmra.mxu0 %v2047
      %v2171 = vpop.f32.mrf.mxu0
      %v2172 = vadd.f32 0.0, %v2171
      %2173 = vmatmul.f32.gmra.mxu0 %v2050
      %v2174 = vpop.f32.mrf.mxu0
      %v2175 = vadd.f32 0.0, %v2174
      %2176 = vmatmul.f32.gmra.mxu0 %v2053
      %v2177 = vpop.f32.mrf.mxu0
      %v2178 = vadd.f32 0.0, %v2177
      %2179 = vmatmul.f32.gmra.mxu0 %v2056
      %v2180 = vpop.f32.mrf.mxu0
      %v2181 = vadd.f32 0.0, %v2180
      %2182 = vmatmul.f32.gmra.mxu0 %v2059
      %v2183 = vpop.f32.mrf.mxu0
      %v2184 = vadd.f32 0.0, %v2183
      %2185 = vmatmul.f32.gmra.mxu0 %v2062
      %v2186 = vpop.f32.mrf.mxu0
      %v2187 = vadd.f32 0.0, %v2186
      %2188 = vmatmul.f32.gmra.mxu0 %v2065
      %v2189 = vpop.f32.mrf.mxu0
      %v2190 = vadd.f32 0.0, %v2189
      %2191 = vmatmul.f32.gmra.mxu0 %v2068
      %v2192 = vpop.f32.mrf.mxu0
      %v2193 = vadd.f32 0.0, %v2192
      %2194 = vmatmul.f32.gmra.mxu0 %v2071
      %v2195 = vpop.f32.mrf.mxu0
      %v2196 = vadd.f32 0.0, %v2195
      %2197 = vmatmul.f32.gmra.mxu0 %v2074
      %v2198 = vpop.f32.mrf.mxu0
      %v2199 = vadd.f32 0.0, %v2198
      %2200 = vmatmul.f32.gmra.mxu0 %v2077
      %v2201 = vpop.f32.mrf.mxu0
      %v2202 = vadd.f32 0.0, %v2201
      %2203 = vmatmul.f32.gmra.mxu0 %v2080
      %v2204 = vpop.f32.mrf.mxu0
      %v2205 = vadd.f32 0.0, %v2204
      %2206 = vmatmul.f32.gmra.mxu0 %v2083
      %v2207 = vpop.f32.mrf.mxu0
      %v2208 = vadd.f32 0.0, %v2207
      %2209 = vmatmul.f32.gmra.mxu0 %v2086
      %v2210 = vpop.f32.mrf.mxu0
      %v2211 = vadd.f32 0.0, %v2210
      %2212 = vmatmul.f32.gmra.mxu0 %v2089
      %v2213 = vpop.f32.mrf.mxu0
      %v2214 = vadd.f32 0.0, %v2213
      %2215 = vmatmul.f32.gmra.mxu0 %v2092
      %v2216 = vpop.f32.mrf.mxu0
      %v2217 = vadd.f32 0.0, %v2216
      %2218 = vdwg.mxu0
      %v2219 = vadd.f32 %v1911, %v2112
      %v2220 = vadd.f32 %v1912, %v2115
      %v2221 = vadd.f32 %v1913, %v2118
      %v2222 = vadd.f32 %v1914, %v2121
      %v2223 = vadd.f32 %v1915, %v2124
      %v2224 = vadd.f32 %v1916, %v2127
      %v2225 = vadd.f32 %v1917, %v2130
      %v2226 = vadd.f32 %v1918, %v2133
      %v2227 = vadd.f32 %v1919, %v2136
      %v2228 = vadd.f32 %v1920, %v2139
      %v2229 = vadd.f32 %v1921, %v2142
      %v2230 = vadd.f32 %v1922, %v2145
      %v2231 = vadd.f32 %v1923, %v2148
      %v2232 = vadd.f32 %v1924, %v2151
      %v2233 = vadd.f32 %v1925, %v2154
      %v2234 = vadd.f32 %v1926, %v2157
      %v2235 = vadd.f32 %v1927, %v2160
      %v2236 = vadd.f32 %v1928, %v2163
      %v2237 = vadd.f32 %v1929, %v2166
      %v2238 = vadd.f32 %v1930, %v2169
      %v2239 = vadd.f32 %v1931, %v2172
      %v2240 = vadd.f32 %v1932, %v2175
      %v2241 = vadd.f32 %v1933, %v2178
      %v2242 = vadd.f32 %v1934, %v2181
      %v2243 = vadd.f32 %v1935, %v2184
      %v2244 = vadd.f32 %v1936, %v2187
      %v2245 = vadd.f32 %v1937, %v2190
      %v2246 = vadd.f32 %v1938, %v2193
      %v2247 = vadd.f32 %v1939, %v2196
      %v2248 = vadd.f32 %v1940, %v2199
      %v2249 = vadd.f32 %v1941, %v2202
      %v2250 = vadd.f32 %v1942, %v2205
      %v2251 = vadd.f32 %v1943, %v2208
      %v2252 = vadd.f32 %v1944, %v2211
      %v2253 = vadd.f32 %v1945, %v2214
      %v2254 = vadd.f32 %v1946, %v2217
      %v2255 = vld [vmem:[%s165 + $0x25] sm:$0xff]
      %v2256 = vld [vmem:[%s165 + $0x2d] sm:$0xff]
      %v2257 = vld [vmem:[%s165 + $0x35] sm:$0xff]
      %v2258 = vld [vmem:[%s165 + $0x3d] sm:$0xff]
      %v2259 = vld [vmem:[%s165 + $0x45] sm:$0xff]
      %v2260 = vld [vmem:[%s165 + $0x4d] sm:$0xff]
      %v2261 = vld [vmem:[%s165 + $0x55] sm:$0xff]
      %v2262 = vld [vmem:[%s165 + $0x5d] sm:$0xff]
      %v2263 = vld [vmem:[%s165 + $0x65] sm:$0xff]
      %v2264 = vld [vmem:[%s165 + $0x6d] sm:$0xff]
      %v2265 = vld [vmem:[%s165 + $0x75] sm:$0xff]
      %v2266 = vld [vmem:[%s165 + $0x7d] sm:$0xff]
      %v2267 = vld [vmem:[%s165 + $0x85] sm:$0xff]
      %v2268 = vld [vmem:[%s165 + $0x8d] sm:$0xff]
      %v2269 = vld [vmem:[%s165 + $0x95] sm:$0xff]
      %v2270 = vld [vmem:[%s165 + $0x9d] sm:$0xff]
      %v2271 = vld [vmem:[%s165 + $0xa5] sm:$0xff]
      %v2272 = vld [vmem:[%s165 + $0xad] sm:$0xff]
      %v2273 = vld [vmem:[%s165 + $0xb5] sm:$0xff]
      %v2274 = vld [vmem:[%s165 + $0xbd] sm:$0xff]
      %v2275 = vld [vmem:[%s165 + $0xc5] sm:$0xff]
      %v2276 = vld [vmem:[%s165 + $0xcd] sm:$0xff]
      %v2277 = vld [vmem:[%s165 + $0xd5] sm:$0xff]
      %v2278 = vld [vmem:[%s165 + $0xdd] sm:$0xff]
      %v2279 = vld [vmem:[%s165 + $0xe5] sm:$0xff]
      %v2280 = vld [vmem:[%s165 + $0xed] sm:$0xff]
      %v2281 = vld [vmem:[%s165 + $0xf5] sm:$0xff]
      %v2282 = vld [vmem:[%s165 + $0xfd] sm:$0xff]
      %v2283 = vld [vmem:[%s165 + $0x105] sm:$0xff]
      %v2284 = vld [vmem:[%s165 + $0x10d] sm:$0xff]
      %v2285 = vld [vmem:[%s165 + $0x115] sm:$0xff]
      %v2286 = vld [vmem:[%s165 + $0x11d] sm:$0xff]
      %v2287 = vld [vmem:[%s165 + $0x125] sm:$0xff]
      %v2288 = vld [vmem:[%s165 + $0x12d] sm:$0xff]
      %v2289 = vld [vmem:[%s165 + $0x135] sm:$0xff]
      %v2290 = vld [vmem:[%s165 + $0x13d] sm:$0xff]
      %s2291 = scalar_lea.vmem %s1, 112
      %v2292 = vld [vmem:[%s2291] sm:$0xff]
      %v2293 = vld [vmem:[%s2291 + $0x8] sm:$0xff]
      %v2295 = vsel %vm248, %v2255, 0
      %v2298 = vsel %vm248, %v2256, 0
      %v2301 = vsel %vm248, %v2257, 0
      %v2304 = vsel %vm248, %v2258, 0
      %v2307 = vsel %vm248, %v2259, 0
      %v2310 = vsel %vm248, %v2260, 0
      %v2313 = vsel %vm248, %v2261, 0
      %v2316 = vsel %vm248, %v2262, 0
      %v2319 = vsel %vm248, %v2263, 0
      %v2322 = vsel %vm248, %v2264, 0
      %v2325 = vsel %vm248, %v2265, 0
      %v2328 = vsel %vm248, %v2266, 0
      %v2331 = vsel %vm248, %v2267, 0
      %v2334 = vsel %vm248, %v2268, 0
      %v2337 = vsel %vm248, %v2269, 0
      %v2340 = vsel %vm248, %v2270, 0
      %v2343 = vsel %vm248, %v2271, 0
      %v2346 = vsel %vm248, %v2272, 0
      %v2349 = vsel %vm248, %v2273, 0
      %v2352 = vsel %vm248, %v2274, 0
      %v2355 = vsel %vm248, %v2275, 0
      %v2358 = vsel %vm248, %v2276, 0
      %v2361 = vsel %vm248, %v2277, 0
      %v2364 = vsel %vm248, %v2278, 0
      %v2367 = vsel %vm248, %v2279, 0
      %v2370 = vsel %vm248, %v2280, 0
      %v2373 = vsel %vm248, %v2281, 0
      %v2376 = vsel %vm248, %v2282, 0
      %v2379 = vsel %vm248, %v2283, 0
      %v2382 = vsel %vm248, %v2284, 0
      %v2385 = vsel %vm248, %v2285, 0
      %v2388 = vsel %vm248, %v2286, 0
      %v2391 = vsel %vm248, %v2287, 0
      %v2394 = vsel %vm248, %v2288, 0
      %v2397 = vsel %vm248, %v2289, 0
      %v2400 = vsel %vm248, %v2290, 0
      %2402 = vmatpush.msra.mxu0 0.0
      %2403 = vmatpush.msra.mxu0 0.0
      %2404 = vmatpush.msra.mxu0 0.0
      %2405 = vmatpush.msra.mxu0 0.0
      %2406 = vmatpush.msra.mxu0 0.0
      %2407 = vmatpush.msra.mxu0 0.0
      %2408 = vmatpush.msra.mxu0 0.0
      %2409 = vmatpush.msra.mxu0 0.0
      %2410 = vmatpush.msra.mxu0 0.0
      %2411 = vmatpush.msra.mxu0 0.0
      %2412 = vmatpush.msra.mxu0 0.0
      %2413 = vmatpush.msra.mxu0 0.0
      %2414 = vmatpush.msra.mxu0 0.0
      %2415 = vmatpush.msra.mxu0 0.0
      %2416 = vmatpush.msra.mxu0 %v2293
      %2417 = vmatpush.msra.mxu0 %v2292
      %2418 = vmatmul.f32.gmra.mxu0 %v2295
      %v2419 = vpop.f32.mrf.mxu0
      %v2420 = vadd.f32 0.0, %v2419
      %2421 = vmatmul.f32.gmra.mxu0 %v2298
      %v2422 = vpop.f32.mrf.mxu0
      %v2423 = vadd.f32 0.0, %v2422
      %2424 = vmatmul.f32.gmra.mxu0 %v2301
      %v2425 = vpop.f32.mrf.mxu0
      %v2426 = vadd.f32 0.0, %v2425
      %2427 = vmatmul.f32.gmra.mxu0 %v2304
      %v2428 = vpop.f32.mrf.mxu0
      %v2429 = vadd.f32 0.0, %v2428
      %2430 = vmatmul.f32.gmra.mxu0 %v2307
      %v2431 = vpop.f32.mrf.mxu0
      %v2432 = vadd.f32 0.0, %v2431
      %2433 = vmatmul.f32.gmra.mxu0 %v2310
      %v2434 = vpop.f32.mrf.mxu0
      %v2435 = vadd.f32 0.0, %v2434
      %2436 = vmatmul.f32.gmra.mxu0 %v2313
      %v2437 = vpop.f32.mrf.mxu0
      %v2438 = vadd.f32 0.0, %v2437
      %2439 = vmatmul.f32.gmra.mxu0 %v2316
      %v2440 = vpop.f32.mrf.mxu0
      %v2441 = vadd.f32 0.0, %v2440
      %2442 = vmatmul.f32.gmra.mxu0 %v2319
      %v2443 = vpop.f32.mrf.mxu0
      %v2444 = vadd.f32 0.0, %v2443
      %2445 = vmatmul.f32.gmra.mxu0 %v2322
      %v2446 = vpop.f32.mrf.mxu0
      %v2447 = vadd.f32 0.0, %v2446
      %2448 = vmatmul.f32.gmra.mxu0 %v2325
      %v2449 = vpop.f32.mrf.mxu0
      %v2450 = vadd.f32 0.0, %v2449
      %2451 = vmatmul.f32.gmra.mxu0 %v2328
      %v2452 = vpop.f32.mrf.mxu0
      %v2453 = vadd.f32 0.0, %v2452
      %2454 = vmatmul.f32.gmra.mxu0 %v2331
      %v2455 = vpop.f32.mrf.mxu0
      %v2456 = vadd.f32 0.0, %v2455
      %2457 = vmatmul.f32.gmra.mxu0 %v2334
      %v2458 = vpop.f32.mrf.mxu0
      %v2459 = vadd.f32 0.0, %v2458
      %2460 = vmatmul.f32.gmra.mxu0 %v2337
      %v2461 = vpop.f32.mrf.mxu0
      %v2462 = vadd.f32 0.0, %v2461
      %2463 = vmatmul.f32.gmra.mxu0 %v2340
      %v2464 = vpop.f32.mrf.mxu0
      %v2465 = vadd.f32 0.0, %v2464
      %2466 = vmatmul.f32.gmra.mxu0 %v2343
      %v2467 = vpop.f32.mrf.mxu0
      %v2468 = vadd.f32 0.0, %v2467
      %2469 = vmatmul.f32.gmra.mxu0 %v2346
      %v2470 = vpop.f32.mrf.mxu0
      %v2471 = vadd.f32 0.0, %v2470
      %2472 = vmatmul.f32.gmra.mxu0 %v2349
      %v2473 = vpop.f32.mrf.mxu0
      %v2474 = vadd.f32 0.0, %v2473
      %2475 = vmatmul.f32.gmra.mxu0 %v2352
      %v2476 = vpop.f32.mrf.mxu0
      %v2477 = vadd.f32 0.0, %v2476
      %2478 = vmatmul.f32.gmra.mxu0 %v2355
      %v2479 = vpop.f32.mrf.mxu0
      %v2480 = vadd.f32 0.0, %v2479
      %2481 = vmatmul.f32.gmra.mxu0 %v2358
      %v2482 = vpop.f32.mrf.mxu0
      %v2483 = vadd.f32 0.0, %v2482
      %2484 = vmatmul.f32.gmra.mxu0 %v2361
      %v2485 = vpop.f32.mrf.mxu0
      %v2486 = vadd.f32 0.0, %v2485
      %2487 = vmatmul.f32.gmra.mxu0 %v2364
      %v2488 = vpop.f32.mrf.mxu0
      %v2489 = vadd.f32 0.0, %v2488
      %2490 = vmatmul.f32.gmra.mxu0 %v2367
      %v2491 = vpop.f32.mrf.mxu0
      %v2492 = vadd.f32 0.0, %v2491
      %2493 = vmatmul.f32.gmra.mxu0 %v2370
      %v2494 = vpop.f32.mrf.mxu0
      %v2495 = vadd.f32 0.0, %v2494
      %2496 = vmatmul.f32.gmra.mxu0 %v2373
      %v2497 = vpop.f32.mrf.mxu0
      %v2498 = vadd.f32 0.0, %v2497
      %2499 = vmatmul.f32.gmra.mxu0 %v2376
      %v2500 = vpop.f32.mrf.mxu0
      %v2501 = vadd.f32 0.0, %v2500
      %2502 = vmatmul.f32.gmra.mxu0 %v2379
      %v2503 = vpop.f32.mrf.mxu0
      %v2504 = vadd.f32 0.0, %v2503
      %2505 = vmatmul.f32.gmra.mxu0 %v2382
      %v2506 = vpop.f32.mrf.mxu0
      %v2507 = vadd.f32 0.0, %v2506
      %2508 = vmatmul.f32.gmra.mxu0 %v2385
      %v2509 = vpop.f32.mrf.mxu0
      %v2510 = vadd.f32 0.0, %v2509
      %2511 = vmatmul.f32.gmra.mxu0 %v2388
      %v2512 = vpop.f32.mrf.mxu0
      %v2513 = vadd.f32 0.0, %v2512
      %2514 = vmatmul.f32.gmra.mxu0 %v2391
      %v2515 = vpop.f32.mrf.mxu0
      %v2516 = vadd.f32 0.0, %v2515
      %2517 = vmatmul.f32.gmra.mxu0 %v2394
      %v2518 = vpop.f32.mrf.mxu0
      %v2519 = vadd.f32 0.0, %v2518
      %2520 = vmatmul.f32.gmra.mxu0 %v2397
      %v2521 = vpop.f32.mrf.mxu0
      %v2522 = vadd.f32 0.0, %v2521
      %2523 = vmatmul.f32.gmra.mxu0 %v2400
      %v2524 = vpop.f32.mrf.mxu0
      %v2525 = vadd.f32 0.0, %v2524
      %2526 = vdwg.mxu0
      %v2527 = vadd.f32 %v2219, %v2420
      %v2528 = vadd.f32 %v2220, %v2423
      %v2529 = vadd.f32 %v2221, %v2426
      %v2530 = vadd.f32 %v2222, %v2429
      %v2531 = vadd.f32 %v2223, %v2432
      %v2532 = vadd.f32 %v2224, %v2435
      %v2533 = vadd.f32 %v2225, %v2438
      %v2534 = vadd.f32 %v2226, %v2441
      %v2535 = vadd.f32 %v2227, %v2444
      %v2536 = vadd.f32 %v2228, %v2447
      %v2537 = vadd.f32 %v2229, %v2450
      %v2538 = vadd.f32 %v2230, %v2453
      %v2539 = vadd.f32 %v2231, %v2456
      %v2540 = vadd.f32 %v2232, %v2459
      %v2541 = vadd.f32 %v2233, %v2462
      %v2542 = vadd.f32 %v2234, %v2465
      %v2543 = vadd.f32 %v2235, %v2468
      %v2544 = vadd.f32 %v2236, %v2471
      %v2545 = vadd.f32 %v2237, %v2474
      %v2546 = vadd.f32 %v2238, %v2477
      %v2547 = vadd.f32 %v2239, %v2480
      %v2548 = vadd.f32 %v2240, %v2483
      %v2549 = vadd.f32 %v2241, %v2486
      %v2550 = vadd.f32 %v2242, %v2489
      %v2551 = vadd.f32 %v2243, %v2492
      %v2552 = vadd.f32 %v2244, %v2495
      %v2553 = vadd.f32 %v2245, %v2498
      %v2554 = vadd.f32 %v2246, %v2501
      %v2555 = vadd.f32 %v2247, %v2504
      %v2556 = vadd.f32 %v2248, %v2507
      %v2557 = vadd.f32 %v2249, %v2510
      %v2558 = vadd.f32 %v2250, %v2513
      %v2559 = vadd.f32 %v2251, %v2516
      %v2560 = vadd.f32 %v2252, %v2519
      %v2561 = vadd.f32 %v2253, %v2522
      %v2562 = vadd.f32 %v2254, %v2525
      %v2563 = vld [vmem:[%s165 + $0x26] sm:$0xff]
      %v2564 = vld [vmem:[%s165 + $0x2e] sm:$0xff]
      %v2565 = vld [vmem:[%s165 + $0x36] sm:$0xff]
      %v2566 = vld [vmem:[%s165 + $0x3e] sm:$0xff]
      %v2567 = vld [vmem:[%s165 + $0x46] sm:$0xff]
      %v2568 = vld [vmem:[%s165 + $0x4e] sm:$0xff]
      %v2569 = vld [vmem:[%s165 + $0x56] sm:$0xff]
      %v2570 = vld [vmem:[%s165 + $0x5e] sm:$0xff]
      %v2571 = vld [vmem:[%s165 + $0x66] sm:$0xff]
      %v2572 = vld [vmem:[%s165 + $0x6e] sm:$0xff]
      %v2573 = vld [vmem:[%s165 + $0x76] sm:$0xff]
      %v2574 = vld [vmem:[%s165 + $0x7e] sm:$0xff]
      %v2575 = vld [vmem:[%s165 + $0x86] sm:$0xff]
      %v2576 = vld [vmem:[%s165 + $0x8e] sm:$0xff]
      %v2577 = vld [vmem:[%s165 + $0x96] sm:$0xff]
      %v2578 = vld [vmem:[%s165 + $0x9e] sm:$0xff]
      %v2579 = vld [vmem:[%s165 + $0xa6] sm:$0xff]
      %v2580 = vld [vmem:[%s165 + $0xae] sm:$0xff]
      %v2581 = vld [vmem:[%s165 + $0xb6] sm:$0xff]
      %v2582 = vld [vmem:[%s165 + $0xbe] sm:$0xff]
      %v2583 = vld [vmem:[%s165 + $0xc6] sm:$0xff]
      %v2584 = vld [vmem:[%s165 + $0xce] sm:$0xff]
      %v2585 = vld [vmem:[%s165 + $0xd6] sm:$0xff]
      %v2586 = vld [vmem:[%s165 + $0xde] sm:$0xff]
      %v2587 = vld [vmem:[%s165 + $0xe6] sm:$0xff]
      %v2588 = vld [vmem:[%s165 + $0xee] sm:$0xff]
      %v2589 = vld [vmem:[%s165 + $0xf6] sm:$0xff]
      %v2590 = vld [vmem:[%s165 + $0xfe] sm:$0xff]
      %v2591 = vld [vmem:[%s165 + $0x106] sm:$0xff]
      %v2592 = vld [vmem:[%s165 + $0x10e] sm:$0xff]
      %v2593 = vld [vmem:[%s165 + $0x116] sm:$0xff]
      %v2594 = vld [vmem:[%s165 + $0x11e] sm:$0xff]
      %v2595 = vld [vmem:[%s165 + $0x126] sm:$0xff]
      %v2596 = vld [vmem:[%s165 + $0x12e] sm:$0xff]
      %v2597 = vld [vmem:[%s165 + $0x136] sm:$0xff]
      %v2598 = vld [vmem:[%s165 + $0x13e] sm:$0xff]
      %s2599 = scalar_lea.vmem %s1, 128
      %v2600 = vld [vmem:[%s2599] sm:$0xff]
      %v2601 = vld [vmem:[%s2599 + $0x8] sm:$0xff]
      %v2603 = vsel %vm248, %v2563, 0
      %v2606 = vsel %vm248, %v2564, 0
      %v2609 = vsel %vm248, %v2565, 0
      %v2612 = vsel %vm248, %v2566, 0
      %v2615 = vsel %vm248, %v2567, 0
      %v2618 = vsel %vm248, %v2568, 0
      %v2621 = vsel %vm248, %v2569, 0
      %v2624 = vsel %vm248, %v2570, 0
      %v2627 = vsel %vm248, %v2571, 0
      %v2630 = vsel %vm248, %v2572, 0
      %v2633 = vsel %vm248, %v2573, 0
      %v2636 = vsel %vm248, %v2574, 0
      %v2639 = vsel %vm248, %v2575, 0
      %v2642 = vsel %vm248, %v2576, 0
      %v2645 = vsel %vm248, %v2577, 0
      %v2648 = vsel %vm248, %v2578, 0
      %v2651 = vsel %vm248, %v2579, 0
      %v2654 = vsel %vm248, %v2580, 0
      %v2657 = vsel %vm248, %v2581, 0
      %v2660 = vsel %vm248, %v2582, 0
      %v2663 = vsel %vm248, %v2583, 0
      %v2666 = vsel %vm248, %v2584, 0
      %v2669 = vsel %vm248, %v2585, 0
      %v2672 = vsel %vm248, %v2586, 0
      %v2675 = vsel %vm248, %v2587, 0
      %v2678 = vsel %vm248, %v2588, 0
      %v2681 = vsel %vm248, %v2589, 0
      %v2684 = vsel %vm248, %v2590, 0
      %v2687 = vsel %vm248, %v2591, 0
      %v2690 = vsel %vm248, %v2592, 0
      %v2693 = vsel %vm248, %v2593, 0
      %v2696 = vsel %vm248, %v2594, 0
      %v2699 = vsel %vm248, %v2595, 0
      %v2702 = vsel %vm248, %v2596, 0
      %v2705 = vsel %vm248, %v2597, 0
      %v2708 = vsel %vm248, %v2598, 0
      %2710 = vmatpush.msra.mxu0 0.0
      %2711 = vmatpush.msra.mxu0 0.0
      %2712 = vmatpush.msra.mxu0 0.0
      %2713 = vmatpush.msra.mxu0 0.0
      %2714 = vmatpush.msra.mxu0 0.0
      %2715 = vmatpush.msra.mxu0 0.0
      %2716 = vmatpush.msra.mxu0 0.0
      %2717 = vmatpush.msra.mxu0 0.0
      %2718 = vmatpush.msra.mxu0 0.0
      %2719 = vmatpush.msra.mxu0 0.0
      %2720 = vmatpush.msra.mxu0 0.0
      %2721 = vmatpush.msra.mxu0 0.0
      %2722 = vmatpush.msra.mxu0 0.0
      %2723 = vmatpush.msra.mxu0 0.0
      %2724 = vmatpush.msra.mxu0 %v2601
      %2725 = vmatpush.msra.mxu0 %v2600
      %2726 = vmatmul.f32.gmra.mxu0 %v2603
      %v2727 = vpop.f32.mrf.mxu0
      %v2728 = vadd.f32 0.0, %v2727
      %2729 = vmatmul.f32.gmra.mxu0 %v2606
      %v2730 = vpop.f32.mrf.mxu0
      %v2731 = vadd.f32 0.0, %v2730
      %2732 = vmatmul.f32.gmra.mxu0 %v2609
      %v2733 = vpop.f32.mrf.mxu0
      %v2734 = vadd.f32 0.0, %v2733
      %2735 = vmatmul.f32.gmra.mxu0 %v2612
      %v2736 = vpop.f32.mrf.mxu0
      %v2737 = vadd.f32 0.0, %v2736
      %2738 = vmatmul.f32.gmra.mxu0 %v2615
      %v2739 = vpop.f32.mrf.mxu0
      %v2740 = vadd.f32 0.0, %v2739
      %2741 = vmatmul.f32.gmra.mxu0 %v2618
      %v2742 = vpop.f32.mrf.mxu0
      %v2743 = vadd.f32 0.0, %v2742
      %2744 = vmatmul.f32.gmra.mxu0 %v2621
      %v2745 = vpop.f32.mrf.mxu0
      %v2746 = vadd.f32 0.0, %v2745
      %2747 = vmatmul.f32.gmra.mxu0 %v2624
      %v2748 = vpop.f32.mrf.mxu0
      %v2749 = vadd.f32 0.0, %v2748
      %2750 = vmatmul.f32.gmra.mxu0 %v2627
      %v2751 = vpop.f32.mrf.mxu0
      %v2752 = vadd.f32 0.0, %v2751
      %2753 = vmatmul.f32.gmra.mxu0 %v2630
      %v2754 = vpop.f32.mrf.mxu0
      %v2755 = vadd.f32 0.0, %v2754
      %2756 = vmatmul.f32.gmra.mxu0 %v2633
      %v2757 = vpop.f32.mrf.mxu0
      %v2758 = vadd.f32 0.0, %v2757
      %2759 = vmatmul.f32.gmra.mxu0 %v2636
      %v2760 = vpop.f32.mrf.mxu0
      %v2761 = vadd.f32 0.0, %v2760
      %2762 = vmatmul.f32.gmra.mxu0 %v2639
      %v2763 = vpop.f32.mrf.mxu0
      %v2764 = vadd.f32 0.0, %v2763
      %2765 = vmatmul.f32.gmra.mxu0 %v2642
      %v2766 = vpop.f32.mrf.mxu0
      %v2767 = vadd.f32 0.0, %v2766
      %2768 = vmatmul.f32.gmra.mxu0 %v2645
      %v2769 = vpop.f32.mrf.mxu0
      %v2770 = vadd.f32 0.0, %v2769
      %2771 = vmatmul.f32.gmra.mxu0 %v2648
      %v2772 = vpop.f32.mrf.mxu0
      %v2773 = vadd.f32 0.0, %v2772
      %2774 = vmatmul.f32.gmra.mxu0 %v2651
      %v2775 = vpop.f32.mrf.mxu0
      %v2776 = vadd.f32 0.0, %v2775
      %2777 = vmatmul.f32.gmra.mxu0 %v2654
      %v2778 = vpop.f32.mrf.mxu0
      %v2779 = vadd.f32 0.0, %v2778
      %2780 = vmatmul.f32.gmra.mxu0 %v2657
      %v2781 = vpop.f32.mrf.mxu0
      %v2782 = vadd.f32 0.0, %v2781
      %2783 = vmatmul.f32.gmra.mxu0 %v2660
      %v2784 = vpop.f32.mrf.mxu0
      %v2785 = vadd.f32 0.0, %v2784
      %2786 = vmatmul.f32.gmra.mxu0 %v2663
      %v2787 = vpop.f32.mrf.mxu0
      %v2788 = vadd.f32 0.0, %v2787
      %2789 = vmatmul.f32.gmra.mxu0 %v2666
      %v2790 = vpop.f32.mrf.mxu0
      %v2791 = vadd.f32 0.0, %v2790
      %2792 = vmatmul.f32.gmra.mxu0 %v2669
      %v2793 = vpop.f32.mrf.mxu0
      %v2794 = vadd.f32 0.0, %v2793
      %2795 = vmatmul.f32.gmra.mxu0 %v2672
      %v2796 = vpop.f32.mrf.mxu0
      %v2797 = vadd.f32 0.0, %v2796
      %2798 = vmatmul.f32.gmra.mxu0 %v2675
      %v2799 = vpop.f32.mrf.mxu0
      %v2800 = vadd.f32 0.0, %v2799
      %2801 = vmatmul.f32.gmra.mxu0 %v2678
      %v2802 = vpop.f32.mrf.mxu0
      %v2803 = vadd.f32 0.0, %v2802
      %2804 = vmatmul.f32.gmra.mxu0 %v2681
      %v2805 = vpop.f32.mrf.mxu0
      %v2806 = vadd.f32 0.0, %v2805
      %2807 = vmatmul.f32.gmra.mxu0 %v2684
      %v2808 = vpop.f32.mrf.mxu0
      %v2809 = vadd.f32 0.0, %v2808
      %2810 = vmatmul.f32.gmra.mxu0 %v2687
      %v2811 = vpop.f32.mrf.mxu0
      %v2812 = vadd.f32 0.0, %v2811
      %2813 = vmatmul.f32.gmra.mxu0 %v2690
      %v2814 = vpop.f32.mrf.mxu0
      %v2815 = vadd.f32 0.0, %v2814
      %2816 = vmatmul.f32.gmra.mxu0 %v2693
      %v2817 = vpop.f32.mrf.mxu0
      %v2818 = vadd.f32 0.0, %v2817
      %2819 = vmatmul.f32.gmra.mxu0 %v2696
      %v2820 = vpop.f32.mrf.mxu0
      %v2821 = vadd.f32 0.0, %v2820
      %2822 = vmatmul.f32.gmra.mxu0 %v2699
      %v2823 = vpop.f32.mrf.mxu0
      %v2824 = vadd.f32 0.0, %v2823
      %2825 = vmatmul.f32.gmra.mxu0 %v2702
      %v2826 = vpop.f32.mrf.mxu0
      %v2827 = vadd.f32 0.0, %v2826
      %2828 = vmatmul.f32.gmra.mxu0 %v2705
      %v2829 = vpop.f32.mrf.mxu0
      %v2830 = vadd.f32 0.0, %v2829
      %2831 = vmatmul.f32.gmra.mxu0 %v2708
      %v2832 = vpop.f32.mrf.mxu0
      %v2833 = vadd.f32 0.0, %v2832
      %2834 = vdwg.mxu0
      %v2835 = vadd.f32 %v2527, %v2728
      %v2836 = vadd.f32 %v2528, %v2731
      %v2837 = vadd.f32 %v2529, %v2734
      %v2838 = vadd.f32 %v2530, %v2737
      %v2839 = vadd.f32 %v2531, %v2740
      %v2840 = vadd.f32 %v2532, %v2743
      %v2841 = vadd.f32 %v2533, %v2746
      %v2842 = vadd.f32 %v2534, %v2749
      %v2843 = vadd.f32 %v2535, %v2752
      %v2844 = vadd.f32 %v2536, %v2755
      %v2845 = vadd.f32 %v2537, %v2758
      %v2846 = vadd.f32 %v2538, %v2761
      %v2847 = vadd.f32 %v2539, %v2764
      %v2848 = vadd.f32 %v2540, %v2767
      %v2849 = vadd.f32 %v2541, %v2770
      %v2850 = vadd.f32 %v2542, %v2773
      %v2851 = vadd.f32 %v2543, %v2776
      %v2852 = vadd.f32 %v2544, %v2779
      %v2853 = vadd.f32 %v2545, %v2782
      %v2854 = vadd.f32 %v2546, %v2785
      %v2855 = vadd.f32 %v2547, %v2788
      %v2856 = vadd.f32 %v2548, %v2791
      %v2857 = vadd.f32 %v2549, %v2794
      %v2858 = vadd.f32 %v2550, %v2797
      %v2859 = vadd.f32 %v2551, %v2800
      %v2860 = vadd.f32 %v2552, %v2803
      %v2861 = vadd.f32 %v2553, %v2806
      %v2862 = vadd.f32 %v2554, %v2809
      %v2863 = vadd.f32 %v2555, %v2812
      %v2864 = vadd.f32 %v2556, %v2815
      %v2865 = vadd.f32 %v2557, %v2818
      %v2866 = vadd.f32 %v2558, %v2821
      %v2867 = vadd.f32 %v2559, %v2824
      %v2868 = vadd.f32 %v2560, %v2827
      %v2869 = vadd.f32 %v2561, %v2830
      %v2870 = vadd.f32 %v2562, %v2833
      %v2871 = vld [vmem:[%s2] sm:$0x1]
      %v2873 = vperm.slane %v2871, 0
      %v2875 = vadd.f32 %v2835, %v2873
      %v2876 = vadd.f32 %v2836, %v2873
      %v2877 = vadd.f32 %v2837, %v2873
      %v2878 = vadd.f32 %v2838, %v2873
      %v2879 = vadd.f32 %v2839, %v2873
      %v2880 = vadd.f32 %v2840, %v2873
      %v2881 = vadd.f32 %v2841, %v2873
      %v2882 = vadd.f32 %v2842, %v2873
      %v2883 = vadd.f32 %v2843, %v2873
      %v2884 = vadd.f32 %v2844, %v2873
      %v2885 = vadd.f32 %v2845, %v2873
      %v2886 = vadd.f32 %v2846, %v2873
      %v2887 = vadd.f32 %v2847, %v2873
      %v2888 = vadd.f32 %v2848, %v2873
      %v2889 = vadd.f32 %v2849, %v2873
      %v2890 = vadd.f32 %v2850, %v2873
      %v2891 = vadd.f32 %v2851, %v2873
      %v2892 = vadd.f32 %v2852, %v2873
      %v2893 = vadd.f32 %v2853, %v2873
      %v2894 = vadd.f32 %v2854, %v2873
      %v2895 = vadd.f32 %v2855, %v2873
      %v2896 = vadd.f32 %v2856, %v2873
      %v2897 = vadd.f32 %v2857, %v2873
      %v2898 = vadd.f32 %v2858, %v2873
      %v2899 = vadd.f32 %v2859, %v2873
      %v2900 = vadd.f32 %v2860, %v2873
      %v2901 = vadd.f32 %v2861, %v2873
      %v2902 = vadd.f32 %v2862, %v2873
      %v2903 = vadd.f32 %v2863, %v2873
      %v2904 = vadd.f32 %v2864, %v2873
      %v2905 = vadd.f32 %v2865, %v2873
      %v2906 = vadd.f32 %v2866, %v2873
      %v2907 = vadd.f32 %v2867, %v2873
      %v2908 = vadd.f32 %v2868, %v2873
      %v2909 = vadd.f32 %v2869, %v2873
      %v2910 = vadd.f32 %v2870, %v2873
      %vm2911 = vcmask 31744
      %2912 = vst.msk [vmem:[%s170] sm:$0xff] %vm2911, %v2875
      %2913 = vst.msk [vmem:[%s170 + $0x8] sm:$0xff] %vm2911, %v2876
      %2914 = vst.msk [vmem:[%s170 + $0x10] sm:$0xff] %vm2911, %v2877
      %2915 = vst.msk [vmem:[%s170 + $0x18] sm:$0xff] %vm2911, %v2878
      %2916 = vst.msk [vmem:[%s170 + $0x20] sm:$0xff] %vm2911, %v2879
      %2917 = vst.msk [vmem:[%s170 + $0x28] sm:$0xff] %vm2911, %v2880
      %2918 = vst.msk [vmem:[%s170 + $0x30] sm:$0xff] %vm2911, %v2881
      %2919 = vst.msk [vmem:[%s170 + $0x38] sm:$0xff] %vm2911, %v2882
      %2920 = vst.msk [vmem:[%s170 + $0x40] sm:$0xff] %vm2911, %v2883
      %2921 = vst.msk [vmem:[%s170 + $0x48] sm:$0xff] %vm2911, %v2884
      %2922 = vst.msk [vmem:[%s170 + $0x50] sm:$0xff] %vm2911, %v2885
      %2923 = vst.msk [vmem:[%s170 + $0x58] sm:$0xff] %vm2911, %v2886
      %2924 = vst.msk [vmem:[%s170 + $0x60] sm:$0xff] %vm2911, %v2887
      %2925 = vst.msk [vmem:[%s170 + $0x68] sm:$0xff] %vm2911, %v2888
      %2926 = vst.msk [vmem:[%s170 + $0x70] sm:$0xff] %vm2911, %v2889
      %2927 = vst.msk [vmem:[%s170 + $0x78] sm:$0xff] %vm2911, %v2890
      %2928 = vst.msk [vmem:[%s170 + $0x80] sm:$0xff] %vm2911, %v2891
      %2929 = vst.msk [vmem:[%s170 + $0x88] sm:$0xff] %vm2911, %v2892
      %2930 = vst.msk [vmem:[%s170 + $0x90] sm:$0xff] %vm2911, %v2893
      %2931 = vst.msk [vmem:[%s170 + $0x98] sm:$0xff] %vm2911, %v2894
      %2932 = vst.msk [vmem:[%s170 + $0xa0] sm:$0xff] %vm2911, %v2895
      %2933 = vst.msk [vmem:[%s170 + $0xa8] sm:$0xff] %vm2911, %v2896
      %2934 = vst.msk [vmem:[%s170 + $0xb0] sm:$0xff] %vm2911, %v2897
      %2935 = vst.msk [vmem:[%s170 + $0xb8] sm:$0xff] %vm2911, %v2898
      %2936 = vst.msk [vmem:[%s170 + $0xc0] sm:$0xff] %vm2911, %v2899
      %2937 = vst.msk [vmem:[%s170 + $0xc8] sm:$0xff] %vm2911, %v2900
      %2938 = vst.msk [vmem:[%s170 + $0xd0] sm:$0xff] %vm2911, %v2901
      %2939 = vst.msk [vmem:[%s170 + $0xd8] sm:$0xff] %vm2911, %v2902
      %2940 = vst.msk [vmem:[%s170 + $0xe0] sm:$0xff] %vm2911, %v2903
      %2941 = vst.msk [vmem:[%s170 + $0xe8] sm:$0xff] %vm2911, %v2904
      %2942 = vst.msk [vmem:[%s170 + $0xf0] sm:$0xff] %vm2911, %v2905
      %2943 = vst.msk [vmem:[%s170 + $0xf8] sm:$0xff] %vm2911, %v2906
      %2944 = vst.msk [vmem:[%s170 + $0x100] sm:$0xff] %vm2911, %v2907
      %2945 = vst.msk [vmem:[%s170 + $0x108] sm:$0xff] %vm2911, %v2908
      %2946 = vst.msk [vmem:[%s170 + $0x110] sm:$0xff] %vm2911, %v2909
      %2947 = vst.msk [vmem:[%s170 + $0x118] sm:$0xff] %vm2911, %v2910
      %p2948 = scmp.lt.s32.totalorder %s14, 1
      %s2949 = scalar_select %p2948, %s14, 1
      %s2950 = smul.addr %s2949, 36
      %s2951 = smul.addr %s2950, 8
      %s2952 = scalar_lea.vmem %s3, %s2951
      // Predicated region
      $region33: #{tpu_custom_call.1} parent=31 // pred_check
        %p2953 = pneg %p100
      $region34: #{tpu_custom_call.1} parent=31 // pred_check_branch
        %2955 = sbr.rel (%p2953) target = $region36
      $region35: #{tpu_custom_call.1} parent=31 // pred_region
        _
      $region36: #{tpu_custom_call.1} parent=31 // pred_fallthru
        _
    $region32: #{tpu_custom_call.1} parent=5 // pred_fallthru
      _
    %p2956 = scmp.le.s32.totalorder 2, %s9
    // Predicated region
    $region37: #{tpu_custom_call.1} parent=5 // pred_check
      %p2957 = pneg %p2956
    $region38: #{tpu_custom_call.1} parent=5 // pred_check_branch
      %2959 = sbr.rel (%p2957) target = $region40
    $region39: #{tpu_custom_call.1} parent=5 // pred_region
      %s2960 = ssub.s32 %s9, 2
      // Predicated region
      $region41: #{tpu_custom_call.1} parent=39 // pred_check
        %p2961 = pneg %p106
      $region42: #{tpu_custom_call.1} parent=39 // pred_check_branch
        %2963 = sbr.rel (%p2961) target = $region44
      $region43: #{tpu_custom_call.1} parent=39 // pred_region
        %p2964 = scmp.lt.s32.totalorder %s15, 1
        %s2965 = scalar_select %p2964, %s15, 1
        %s2966 = smul.addr %s2965, 36
        %s2967 = smul.addr %s2966, 8
        %s2968 = scalar_lea.vmem %s3, %s2967
      $region44: #{tpu_custom_call.1} parent=39 // pred_fallthru
        _
    $region40: #{tpu_custom_call.1} parent=5 // pred_fallthru
      _
  $region6: #{tpu_custom_call.1} parent=0 // loop_footer
    %s13 = sadd.s32 1, %s9
  $region7: #{tpu_custom_call.1} parent=0 // loop_footer_branch
    %8 = sbr.rel target = $region3
  $region8: #{tpu_custom_call.1} parent=0 // loop_exit
    _

</llo_original>
